<compile_context>
chip_gen: v6e
topology: v6e:2x2x1
jax: 0.10.0
libtpu: 0.0.40
codegen_flags: <defaults>
</compile_context>

<pallas_src>
import functools

import jax
import jax.numpy as jnp
from jax import lax
from jax.experimental import pallas as pl
from jax.experimental.pallas import tpu as pltpu


def _gat_fused_kernel(x_ref, adj_ref, wp_ref, wa1_ref, wa2t_ref, o_ref, *, n_layers):
    x = x_ref[0]                                     # (N, Dp) f32, lane-dense features
    adj = adj_ref[0].astype(jnp.float32)             # (N, N) 0/1 mask (shipped as bf16)
    edge = adj > 0.0                                 # hoisted out of the layer loop

    n, dp = x.shape
    last_lane = lax.broadcasted_iota(jnp.int32, (n, dp), 1) == (dp - 1)

    for l in range(n_layers):
        wp = wp_ref[l]                               # (Dp, Dp)  zero-padded W
        wa1 = wa1_ref[l]                             # (Dp, 1)   W @ a1 (folded)
        wa2t = wa2t_ref[l]                           # (1, Dp)   (W @ a2)^T (folded)

        # transform=True: h = x @ W  (MXU)
        h = jnp.dot(x, wp, preferred_element_type=jnp.float32)           # (N, Dp)
        # attention logits s[i, j] = a1.h_i + a2.h_j, computed directly from x
        f1 = jnp.dot(x, wa1, preferred_element_type=jnp.float32)         # (N, 1)
        f2 = lax.dot_general(wa2t, x,
                             dimension_numbers=(((1,), (1,)), ((), ())),
                             preferred_element_type=jnp.float32)         # (1, N)
        s = f1 + f2                                                      # (N, N)

        # e_ij = exp(-LeakyReLU_{0.2}(s_ij)) on edges, exactly 0 elsewhere (no 0*inf).
        lrelu = jnp.where(s > 0.0, s, 0.2 * s)
        e = jnp.where(edge, jnp.exp(-lrelu), 0.0)                        # (N, N)

        # Fold the row-sum into the aggregation matmul: ones ride in padded lane Dp-1.
        haug = jnp.where(last_lane, 1.0, h)                              # (N, Dp)
        agg = jnp.dot(e, haug, preferred_element_type=jnp.float32)       # (N, Dp)
        rowsum = agg[:, dp - 1:dp]                                       # (N, 1)
        # Self-loops in adj guarantee rowsum > 0 (reference has no epsilon either).
        hp = agg * pl.reciprocal(rowsum, approx=True)

        # act=True: ELU (clamp exp arg so the dead branch never makes an inf)
        x = jnp.where(hp > 0.0, hp, jnp.exp(jnp.minimum(hp, 0.0)) - 1.0)

    o_ref[0] = x


@functools.partial(jax.jit, static_argnames=("n_layers",))
def gat_forward_fused(x_stk, adj_stk, wp_stk, wa1_stk, wa2t_stk, *, n_layers):
    g, n, dp = x_stk.shape
    kernel = functools.partial(_gat_fused_kernel, n_layers=n_layers)
    return pl.pallas_call(
        kernel,
        out_shape=jax.ShapeDtypeStruct((g, n, dp), jnp.float32),
        grid=(g,),
        in_specs=[
            pl.BlockSpec((1, n, dp), lambda i: (i, 0, 0)),            # x (per graph)
            pl.BlockSpec((1, n, n), lambda i: (i, 0, 0)),             # adj (per graph)
            pl.BlockSpec((n_layers, dp, dp), lambda i: (0, 0, 0)),    # W (padded), shared
            pl.BlockSpec((n_layers, dp, 1), lambda i: (0, 0, 0)),     # W @ a1, shared
            pl.BlockSpec((n_layers, 1, dp), lambda i: (0, 0, 0)),     # (W @ a2)^T, shared
        ],
        out_specs=pl.BlockSpec((1, n, dp), lambda i: (i, 0, 0)),
        compiler_params=pltpu.CompilerParams(
            dimension_semantics=("parallel",)),
    )(x_stk, adj_stk, wp_stk, wa1_stk, wa2t_stk)


# ---------------- parameter / input construction (plain JAX glue) ----------------

def xavier_uniform(key, shape, fan_in, fan_out):
    bound = (6.0 / (fan_in + fan_out)) ** 0.5
    return jax.random.uniform(key, shape, jnp.float32, -bound, bound)


def make_adj(key, n, p=0.15):
    rnd = jax.random.uniform(key, (n, n))
    a = (rnd < p).astype(jnp.float32)
    # guarantee self-loops so every row has at least one neighbor (avoids 0/0)
    return jnp.maximum(a, jnp.eye(n, dtype=jnp.float32))


def pad_x(x, n_pad, d_pad):
    n, d = x.shape
    return jnp.zeros((n_pad, d_pad), jnp.float32).at[:n, :d].set(x)


def pad_adj(adj, n_pad):
    n = adj.shape[0]
    ap = jnp.zeros((n_pad, n_pad), jnp.float32).at[:n, :n].set(adj)
    # self-loops on padding rows ONLY (keeps them finite); real rows are untouched,
    # and padded columns stay 0 so they never contribute to real rows.
    ap = ap + jnp.diag(jnp.where(jnp.arange(n_pad) >= n, 1.0, 0.0))
    return ap.astype(jnp.bfloat16)


def pack_layer_params(layer_params, d, d_pad):
    wps, wa1s, wa2ts = [], [], []
    for w, a1, a2 in layer_params:
        wps.append(jnp.zeros((d_pad, d_pad), jnp.float32).at[:d, :d].set(w))
        wa1s.append(jnp.zeros((d_pad, 1), jnp.float32).at[:d, :].set(w @ a1))
        wa2ts.append(jnp.zeros((1, d_pad), jnp.float32).at[:, :d].set((w @ a2).T))
    return jnp.stack(wps), jnp.stack(wa1s), jnp.stack(wa2ts)


if __name__ == "__main__":
    num_sr, num_tg, embedding_dim, n_layers = 128, 64, 32, 2
    d_pad = 128                       # lane-dense feature axis
    n_pad = max(num_sr, num_tg)       # 128; tg graph zero-padded up to this

    key = jax.random.PRNGKey(0)
    k_sr, k_tg, k_asr, k_atg, k_layers = jax.random.split(key, 5)

    # DoubleEmbedding(init_type='xavier')
    sr_emb = xavier_uniform(k_sr, (num_sr, embedding_dim), embedding_dim, num_sr)
    tg_emb = xavier_uniform(k_tg, (num_tg, embedding_dim), embedding_dim, num_tg)

    # dense 0/1 adjacency masks standing in for torch sparse adj_sr / adj_tg
    adj_sr = make_adj(k_asr, num_sr)
    adj_tg = make_adj(k_atg, num_tg)

    # SpGraphAttentionLayer params: W (D, D), a (1, 2D) -> a1, a2
    layer_params = []
    for lk in jax.random.split(k_layers, n_layers):
        kw, ka = jax.random.split(lk)
        w = xavier_uniform(kw, (embedding_dim, embedding_dim),
                           embedding_dim, embedding_dim)
        a = xavier_uniform(ka, (1, 2 * embedding_dim), 2 * embedding_dim, 1)
        a1 = a[0, :embedding_dim].reshape(embedding_dim, 1)
        a2 = a[0, embedding_dim:].reshape(embedding_dim, 1)
        layer_params.append((w, a1, a2))

    # ---- pack everything into one lane-dense, graph-stacked call ----
    x_stk = jnp.stack([pad_x(sr_emb, n_pad, d_pad), pad_x(tg_emb, n_pad, d_pad)])
    adj_stk = jnp.stack([pad_adj(adj_sr, n_pad), pad_adj(adj_tg, n_pad)])
    wp_stk, wa1_stk, wa2t_stk = pack_layer_params(layer_params, embedding_dim, d_pad)

    out = gat_forward_fused(x_stk, adj_stk, wp_stk, wa1_stk, wa2t_stk,
                            n_layers=n_layers)
    jax.block_until_ready(out)

    sr_out = out[0, :num_sr, :embedding_dim]
    tg_out = out[1, :num_tg, :embedding_dim]

    assert sr_out.shape == (num_sr, embedding_dim)
    assert tg_out.shape == (num_tg, embedding_dim)
    assert bool(jnp.all(jnp.isfinite(sr_out))) and bool(jnp.all(jnp.isfinite(tg_out)))
    print("KERNEL_OK")
</pallas_src>

<mosaic_0001>
module attributes {stable_mosaic.version = 11 : i64} {
  func.func @_gat_fused_kernel(%arg0: i32, %arg1: memref<1x128x128xf32, #tpu.memory_space<vmem>>, %arg2: memref<1x128x128xbf16, #tpu.memory_space<vmem>>, %arg3: memref<2x128x128xf32, #tpu.memory_space<vmem>>, %arg4: memref<2x128x1xf32, #tpu.memory_space<vmem>>, %arg5: memref<2x1x128xf32, #tpu.memory_space<vmem>>, %arg6: memref<1x128x128xf32, #tpu.memory_space<vmem>>) attributes {dimension_semantics = [#tpu.dimension_semantics<parallel>], iteration_bounds = array<i64: 2>, scalar_prefetch = 0 : i64, scratch_operands = 0 : i64, tpu.core_type = #tpu.core_type<tc>, window_params = [{transform_indices = @transform_0, window_bounds = array<i64: 1, 128, 128>}, {transform_indices = @transform_1, window_bounds = array<i64: 1, 128, 128>}, {pipeline_mode = #tpu.pipeline_mode<synchronous>, transform_indices = @transform_2, window_bounds = array<i64: 2, 128, 128>}, {pipeline_mode = #tpu.pipeline_mode<synchronous>, transform_indices = @transform_3, window_bounds = array<i64: 2, 128, 1>}, {pipeline_mode = #tpu.pipeline_mode<synchronous>, transform_indices = @transform_4, window_bounds = array<i64: 2, 1, 128>}, {transform_indices = @transform_5, window_bounds = array<i64: 1, 128, 128>}]} {
    %c0 = arith.constant 0 : index
    %c0_0 = arith.constant 0 : index
    %c0_1 = arith.constant 0 : index
    %0 = vector.load %arg1[%c0, %c0_0, %c0_1] : memref<1x128x128xf32, #tpu.memory_space<vmem>>, vector<1x128x128xf32>
    %1 = vector.shape_cast %0 : vector<1x128x128xf32> to vector<128x128xf32>
    %c0_2 = arith.constant 0 : index
    %c0_3 = arith.constant 0 : index
    %c0_4 = arith.constant 0 : index
    %2 = vector.load %arg2[%c0_2, %c0_3, %c0_4] : memref<1x128x128xbf16, #tpu.memory_space<vmem>>, vector<1x128x128xbf16>
    %3 = vector.shape_cast %2 : vector<1x128x128xbf16> to vector<128x128xbf16>
    %4 = arith.extf %3 : vector<128x128xbf16> to vector<128x128xf32>
    %cst = arith.constant 0.000000e+00 : f32
    %5 = vector.broadcast %cst : f32 to vector<128x128xf32>
    %6 = arith.cmpf ogt, %4, %5 : vector<128x128xf32>
    %7 = tpu.iota {dimensions = array<i32: 1>} : vector<128x128xi32>
    %c127_i32 = arith.constant 127 : i32
    %8 = vector.broadcast %c127_i32 : i32 to vector<128x128xi32>
    %9 = arith.cmpi eq, %7, %8 : vector<128x128xi32>
    %c0_5 = arith.constant 0 : index
    %c0_6 = arith.constant 0 : index
    %c0_7 = arith.constant 0 : index
    %10 = vector.load %arg3[%c0_5, %c0_6, %c0_7] : memref<2x128x128xf32, #tpu.memory_space<vmem>>, vector<1x128x128xf32>
    %11 = vector.shape_cast %10 : vector<1x128x128xf32> to vector<128x128xf32>
    %c0_8 = arith.constant 0 : index
    %c0_9 = arith.constant 0 : index
    %c0_10 = arith.constant 0 : index
    %12 = vector.load %arg4[%c0_8, %c0_9, %c0_10] : memref<2x128x1xf32, #tpu.memory_space<vmem>>, vector<1x128x1xf32>
    %13 = vector.shape_cast %12 : vector<1x128x1xf32> to vector<128x1xf32>
    %c0_11 = arith.constant 0 : index
    %c0_12 = arith.constant 0 : index
    %c0_13 = arith.constant 0 : index
    %14 = vector.load %arg5[%c0_11, %c0_12, %c0_13] : memref<2x1x128xf32, #tpu.memory_space<vmem>>, vector<1x1x128xf32>
    %15 = vector.shape_cast %14 : vector<1x1x128xf32> to vector<1x128xf32>
    %cst_14 = arith.constant dense<0.000000e+00> : vector<128x128xf32>
    %16 = tpu.matmul %1, %11, %cst_14 {dimension_numbers = #tpu.dot_dimension_numbers<[1], [0], [0], [1], [0, 0, 1, 1], [], []>} : vector<128x128xf32>, vector<128x128xf32>, vector<128x128xf32> -> vector<128x128xf32>
    %cst_15 = arith.constant dense<0.000000e+00> : vector<128x1xf32>
    %17 = tpu.matmul %1, %13, %cst_15 {dimension_numbers = #tpu.dot_dimension_numbers<[1], [0], [0], [1], [0, 0, 1, 1], [], []>} : vector<128x128xf32>, vector<128x1xf32>, vector<128x1xf32> -> vector<128x1xf32>
    %cst_16 = arith.constant dense<0.000000e+00> : vector<1x128xf32>
    %18 = tpu.matmul %15, %1, %cst_16 {dimension_numbers = #tpu.dot_dimension_numbers<[1], [1], [0], [0], [0, 0, 1, 0], [], []>} : vector<1x128xf32>, vector<128x128xf32>, vector<1x128xf32> -> vector<1x128xf32>
    %19 = vector.broadcast %17 : vector<128x1xf32> to vector<128x128xf32>
    %20 = vector.broadcast %18 : vector<1x128xf32> to vector<128x128xf32>
    %21 = arith.addf %19, %20 : vector<128x128xf32>
    %cst_17 = arith.constant 0.000000e+00 : f32
    %22 = vector.broadcast %cst_17 : f32 to vector<128x128xf32>
    %23 = arith.cmpf ogt, %21, %22 : vector<128x128xf32>
    %cst_18 = arith.constant 2.000000e-01 : f32
    %24 = vector.broadcast %cst_18 : f32 to vector<128x128xf32>
    %25 = arith.mulf %24, %21 : vector<128x128xf32>
    %26 = arith.select %23, %21, %25 : vector<128x128xi1>, vector<128x128xf32>
    %cst_19 = arith.constant 0.000000e+00 : f32
    %27 = vector.broadcast %cst_19 : f32 to vector<128x128xf32>
    %28 = arith.subf %27, %26 : vector<128x128xf32>
    %29 = math.exp %28 : vector<128x128xf32>
    %cst_20 = arith.constant 0.000000e+00 : f32
    %30 = vector.broadcast %cst_20 : f32 to vector<128x128xf32>
    %31 = arith.select %6, %29, %30 : vector<128x128xi1>, vector<128x128xf32>
    %cst_21 = arith.constant 1.000000e+00 : f32
    %32 = vector.broadcast %cst_21 : f32 to vector<128x128xf32>
    %33 = arith.select %9, %32, %16 : vector<128x128xi1>, vector<128x128xf32>
    %cst_22 = arith.constant dense<0.000000e+00> : vector<128x128xf32>
    %34 = tpu.matmul %31, %33, %cst_22 {dimension_numbers = #tpu.dot_dimension_numbers<[1], [0], [0], [1], [0, 0, 1, 1], [], []>} : vector<128x128xf32>, vector<128x128xf32>, vector<128x128xf32> -> vector<128x128xf32>
    %35 = vector.extract_strided_slice %34 {offsets = [0, 127], sizes = [128, 1], strides = [1, 1]} : vector<128x128xf32> to vector<128x1xf32>
    %36 = tpu.reciprocal %35 {approx = true} : vector<128x1xf32> -> vector<128x1xf32>
    %37 = vector.broadcast %36 : vector<128x1xf32> to vector<128x128xf32>
    %38 = arith.mulf %34, %37 : vector<128x128xf32>
    %cst_23 = arith.constant 0.000000e+00 : f32
    %39 = vector.broadcast %cst_23 : f32 to vector<128x128xf32>
    %40 = arith.cmpf ogt, %38, %39 : vector<128x128xf32>
    %cst_24 = arith.constant 0.000000e+00 : f32
    %41 = vector.broadcast %cst_24 : f32 to vector<128x128xf32>
    %42 = arith.minimumf %38, %41 : vector<128x128xf32>
    %43 = math.exp %42 : vector<128x128xf32>
    %cst_25 = arith.constant 1.000000e+00 : f32
    %44 = vector.broadcast %cst_25 : f32 to vector<128x128xf32>
    %45 = arith.subf %43, %44 : vector<128x128xf32>
    %46 = arith.select %40, %38, %45 : vector<128x128xi1>, vector<128x128xf32>
    %c1 = arith.constant 1 : index
    %c0_26 = arith.constant 0 : index
    %c0_27 = arith.constant 0 : index
    %47 = vector.load %arg3[%c1, %c0_26, %c0_27] : memref<2x128x128xf32, #tpu.memory_space<vmem>>, vector<1x128x128xf32>
    %48 = vector.shape_cast %47 : vector<1x128x128xf32> to vector<128x128xf32>
    %c1_28 = arith.constant 1 : index
    %c0_29 = arith.constant 0 : index
    %c0_30 = arith.constant 0 : index
    %49 = vector.load %arg4[%c1_28, %c0_29, %c0_30] : memref<2x128x1xf32, #tpu.memory_space<vmem>>, vector<1x128x1xf32>
    %50 = vector.shape_cast %49 : vector<1x128x1xf32> to vector<128x1xf32>
    %c1_31 = arith.constant 1 : index
    %c0_32 = arith.constant 0 : index
    %c0_33 = arith.constant 0 : index
    %51 = vector.load %arg5[%c1_31, %c0_32, %c0_33] : memref<2x1x128xf32, #tpu.memory_space<vmem>>, vector<1x1x128xf32>
    %52 = vector.shape_cast %51 : vector<1x1x128xf32> to vector<1x128xf32>
    %cst_34 = arith.constant dense<0.000000e+00> : vector<128x128xf32>
    %53 = tpu.matmul %46, %48, %cst_34 {dimension_numbers = #tpu.dot_dimension_numbers<[1], [0], [0], [1], [0, 0, 1, 1], [], []>} : vector<128x128xf32>, vector<128x128xf32>, vector<128x128xf32> -> vector<128x128xf32>
    %cst_35 = arith.constant dense<0.000000e+00> : vector<128x1xf32>
    %54 = tpu.matmul %46, %50, %cst_35 {dimension_numbers = #tpu.dot_dimension_numbers<[1], [0], [0], [1], [0, 0, 1, 1], [], []>} : vector<128x128xf32>, vector<128x1xf32>, vector<128x1xf32> -> vector<128x1xf32>
    %cst_36 = arith.constant dense<0.000000e+00> : vector<1x128xf32>
    %55 = tpu.matmul %52, %46, %cst_36 {dimension_numbers = #tpu.dot_dimension_numbers<[1], [1], [0], [0], [0, 0, 1, 0], [], []>} : vector<1x128xf32>, vector<128x128xf32>, vector<1x128xf32> -> vector<1x128xf32>
    %56 = vector.broadcast %54 : vector<128x1xf32> to vector<128x128xf32>
    %57 = vector.broadcast %55 : vector<1x128xf32> to vector<128x128xf32>
    %58 = arith.addf %56, %57 : vector<128x128xf32>
    %cst_37 = arith.constant 0.000000e+00 : f32
    %59 = vector.broadcast %cst_37 : f32 to vector<128x128xf32>
    %60 = arith.cmpf ogt, %58, %59 : vector<128x128xf32>
    %cst_38 = arith.constant 2.000000e-01 : f32
    %61 = vector.broadcast %cst_38 : f32 to vector<128x128xf32>
    %62 = arith.mulf %61, %58 : vector<128x128xf32>
    %63 = arith.select %60, %58, %62 : vector<128x128xi1>, vector<128x128xf32>
    %cst_39 = arith.constant 0.000000e+00 : f32
    %64 = vector.broadcast %cst_39 : f32 to vector<128x128xf32>
    %65 = arith.subf %64, %63 : vector<128x128xf32>
    %66 = math.exp %65 : vector<128x128xf32>
    %cst_40 = arith.constant 0.000000e+00 : f32
    %67 = vector.broadcast %cst_40 : f32 to vector<128x128xf32>
    %68 = arith.select %6, %66, %67 : vector<128x128xi1>, vector<128x128xf32>
    %cst_41 = arith.constant 1.000000e+00 : f32
    %69 = vector.broadcast %cst_41 : f32 to vector<128x128xf32>
    %70 = arith.select %9, %69, %53 : vector<128x128xi1>, vector<128x128xf32>
    %cst_42 = arith.constant dense<0.000000e+00> : vector<128x128xf32>
    %71 = tpu.matmul %68, %70, %cst_42 {dimension_numbers = #tpu.dot_dimension_numbers<[1], [0], [0], [1], [0, 0, 1, 1], [], []>} : vector<128x128xf32>, vector<128x128xf32>, vector<128x128xf32> -> vector<128x128xf32>
    %72 = vector.extract_strided_slice %71 {offsets = [0, 127], sizes = [128, 1], strides = [1, 1]} : vector<128x128xf32> to vector<128x1xf32>
    %73 = tpu.reciprocal %72 {approx = true} : vector<128x1xf32> -> vector<128x1xf32>
    %74 = vector.broadcast %73 : vector<128x1xf32> to vector<128x128xf32>
    %75 = arith.mulf %71, %74 : vector<128x128xf32>
    %cst_43 = arith.constant 0.000000e+00 : f32
    %76 = vector.broadcast %cst_43 : f32 to vector<128x128xf32>
    %77 = arith.cmpf ogt, %75, %76 : vector<128x128xf32>
    %cst_44 = arith.constant 0.000000e+00 : f32
    %78 = vector.broadcast %cst_44 : f32 to vector<128x128xf32>
    %79 = arith.minimumf %75, %78 : vector<128x128xf32>
    %80 = math.exp %79 : vector<128x128xf32>
    %cst_45 = arith.constant 1.000000e+00 : f32
    %81 = vector.broadcast %cst_45 : f32 to vector<128x128xf32>
    %82 = arith.subf %80, %81 : vector<128x128xf32>
    %83 = arith.select %77, %75, %82 : vector<128x128xi1>, vector<128x128xf32>
    %c0_46 = arith.constant 0 : index
    %c0_47 = arith.constant 0 : index
    %c0_48 = arith.constant 0 : index
    %84 = vector.load %arg6[%c0_46, %c0_47, %c0_48] : memref<1x128x128xf32, #tpu.memory_space<vmem>>, vector<1x128x128xf32>
    %85 = vector.shape_cast %84 : vector<1x128x128xf32> to vector<128x128xf32>
    %86 = vector.shape_cast %83 : vector<128x128xf32> to vector<1x128x128xf32>
    tpu.vector_store %arg6[%c0_46, %c0_47, %c0_48], %86 {strides = array<i32>} : memref<1x128x128xf32, #tpu.memory_space<vmem>>, vector<1x128x128xf32>,
    return
  }
  func.func @transform_0(%arg0: i32) -> (i32, i32, i32) {
    %c0_i32 = arith.constant 0 : i32
    %c0_i32_0 = arith.constant 0 : i32
    %c0_i32_1 = arith.constant 0 : i32
    return %arg0, %c0_i32, %c0_i32_0 : i32, i32, i32
  }
  func.func @transform_1(%arg0: i32) -> (i32, i32, i32) {
    %c0_i32 = arith.constant 0 : i32
    %c0_i32_0 = arith.constant 0 : i32
    %c0_i32_1 = arith.constant 0 : i32
    return %arg0, %c0_i32, %c0_i32_0 : i32, i32, i32
  }
  func.func @transform_2(%arg0: i32) -> (i32, i32, i32) {
    %c0_i32 = arith.constant 0 : i32
    %c0_i32_0 = arith.constant 0 : i32
    %c0_i32_1 = arith.constant 0 : i32
    %c0_i32_2 = arith.constant 0 : i32
    return %c0_i32, %c0_i32_0, %c0_i32_1 : i32, i32, i32
  }
  func.func @transform_3(%arg0: i32) -> (i32, i32, i32) {
    %c0_i32 = arith.constant 0 : i32
    %c0_i32_0 = arith.constant 0 : i32
    %c0_i32_1 = arith.constant 0 : i32
    %c0_i32_2 = arith.constant 0 : i32
    return %c0_i32, %c0_i32_0, %c0_i32_1 : i32, i32, i32
  }
  func.func @transform_4(%arg0: i32) -> (i32, i32, i32) {
    %c0_i32 = arith.constant 0 : i32
    %c0_i32_0 = arith.constant 0 : i32
    %c0_i32_1 = arith.constant 0 : i32
    %c0_i32_2 = arith.constant 0 : i32
    return %c0_i32, %c0_i32_0, %c0_i32_1 : i32, i32, i32
  }
  func.func @transform_5(%arg0: i32) -> (i32, i32, i32) {
    %c0_i32 = arith.constant 0 : i32
    %c0_i32_0 = arith.constant 0 : i32
    %c0_i32_1 = arith.constant 0 : i32
    return %arg0, %c0_i32, %c0_i32_0 : i32, i32, i32
  }
}

</mosaic_0001>

<llo_original>
// kernel: gat_forward_fused.1
$region0: #{gat_forward_fused.1}
  #allocation0 [shape = 'u32[]', space=smem, size = 0x4, offset = 0x4, fixed_abs, tag = 'smem constant byte address 0x4 - core index']
  #allocation1 [shape = 'u32[144,128]{1,0:T(1,128)}', space=vmem, size = 0x12000, scoped, tag = 'internal scratch']
  %s0 = inlined_call_operand.vmem [shape: f32[2,128,128], index: 0, kind: input, shape index: {}]
  %s1 = inlined_call_operand.hbm [shape: bf16[2,128,128], index: 1, kind: input, shape index: {}]
  %s2 = inlined_call_operand.hbm [shape: f32[2,128,128], index: 2, kind: input, shape index: {}]
  %s3 = inlined_call_operand.vmem [shape: f32[2,128,1], index: 3, kind: input, shape index: {}]
  %s4 = inlined_call_operand.vmem [shape: f32[2,1,128], index: 4, kind: input, shape index: {}]
  %s5 = inlined_call_operand.hbm [shape: f32[2,128,128], index: 5, kind: output, shape index: {}]
  %s6 = sld [smem:[#allocation0]]
  $region61: #{gat_forward_fused.1} parent=0
    _
  %s8 = ssub.s32 1, %s6
  %s9 = scalar_select 0, %s8, %s6
  $region1: #{gat_forward_fused.1} parent=0
    #allocation2 [shape = 'u8[65536]{0}', space=vmem, size = 0x10000, scoped, tag = 'input window, operand 1']
    #allocation3 [shape = 's32[2]{0}', space=sflag, size = 0x8, scoped, tag = 'scoped memory for gat_forward_fused.1']
    #allocation4 [shape = 's32[2]{0}', space=sflag, size = 0x8, scoped, tag = 'scoped memory for gat_forward_fused.1']
    #allocation5 [shape = 'u8[131072]{0}', space=vmem, size = 0x20000, scoped, tag = 'input window, operand 2, single buffered']
    #allocation6 [shape = 's32[1]{0}', space=sflag, size = 0x4, scoped, tag = 'scoped memory for gat_forward_fused.1']
    #allocation7 [shape = 'u8[131072]{0}', space=vmem, size = 0x20000, scoped, tag = 'output window, operand 0']
    %10 = vsyncpa [#allocation3], 0
    %s11 = scalar_lea.sflag [#allocation3], 1
    %12 = vsyncpa %s11, 0
    %13 = vsyncpa [#allocation6], 0
    %14 = vsyncpa [#allocation4], 0
    %s15 = scalar_lea.sflag [#allocation4], 1
    %16 = vsyncpa %s15, 0
    loop: start=0, step=1, limit=4
    $region2: #{gat_forward_fused.1} parent=1 // loop_pre_header
      _
    $region3: #{gat_forward_fused.1} parent=1 // loop_header
      %s18 = sphi 0, %s22
      %p19 = scmp.ge.s32.totalorder %s18, 4
      %s28 = sphi 0, %s30
      %s31 = sphi 0, %s28
      %s32 = sphi 0, %s31
      %s48 = sphi 0, %s32
      %s54 = sphi 0, %s56
      %s57 = sphi 0, %s54
      %s58 = sphi 0, %s57
      %s74 = sphi 0, %s58
      %s78 = sphi 0, %s78
      %s80 = sphi 0, %s78
      %s81 = sphi 0, %s80
      %s95 = sphi 0, %s81
      %s99 = sphi 0, %s99
      %s101 = sphi 0, %s99
      %s102 = sphi 0, %s101
      %s116 = sphi 0, %s102
      %s120 = sphi 0, %s120
      %s122 = sphi 0, %s120
      %s123 = sphi 0, %s122
      %s137 = sphi 0, %s123
      %s143 = sphi 0, %s145
      %s146 = sphi 0, %s143
      %s147 = sphi 0, %s146
      %s163 = sphi 0, %s147
    $region4: #{gat_forward_fused.1} parent=1 // loop_header_branch
      %21 = sbr.rel (%p19) target = $region8
    $region5: #{gat_forward_fused.1} parent=1 // loop_body
      %s23 = ssub.s32 %s18, 1
      %s24 = ssub.s32 %s18, 2
      %s25 = sadd.s32 %s18, 1
      %s26 = ssub.s32 %s18, %s25
      %p27 = scmp.eq.s32.totalorder %s26, 0
      %s29 = sadd.s32 %s28, 1
      %s30 = scalar_select %p27, %s28, %s29
      %p33 = pneg %p27
      %p34 = scmp.eq.s32.totalorder %s18, 1
      %p35 = por %p33, %p34
      %p36 = scmp.ne.s32.totalorder %s28, %s31
      %p37 = scmp.eq.s32.totalorder %s18, 0
      %p38 = por %p36, %p37
      %p39 = scmp.ne.s32.totalorder %s28, %s31
      %p40 = scmp.eq.s32.totalorder %s23, 1
      %p41 = por %p39, %p40
      %p42 = scmp.ne.s32.totalorder %s31, %s32
      %p43 = scmp.eq.s32.totalorder %s23, 0
      %p44 = por %p42, %p43
      %p45 = scmp.ne.s32.totalorder %s31, %s32
      %p46 = scmp.eq.s32.totalorder %s24, 1
      %p47 = por %p45, %p46
      %p49 = scmp.ne.s32.totalorder %s32, %s48
      %p50 = scmp.eq.s32.totalorder %s24, 0
      %p51 = por %p49, %p50
      %s52 = ssub.s32 %s18, %s25
      %p53 = scmp.eq.s32.totalorder %s52, 0
      %s55 = sadd.s32 %s54, 1
      %s56 = scalar_select %p53, %s54, %s55
      %p59 = pneg %p53
      %p60 = scmp.eq.s32.totalorder %s18, 1
      %p61 = por %p59, %p60
      %p62 = scmp.ne.s32.totalorder %s54, %s57
      %p63 = scmp.eq.s32.totalorder %s18, 0
      %p64 = por %p62, %p63
      %p65 = scmp.ne.s32.totalorder %s54, %s57
      %p66 = scmp.eq.s32.totalorder %s23, 1
      %p67 = por %p65, %p66
      %p68 = scmp.ne.s32.totalorder %s57, %s58
      %p69 = scmp.eq.s32.totalorder %s23, 0
      %p70 = por %p68, %p69
      %p71 = scmp.ne.s32.totalorder %s57, %s58
      %p72 = scmp.eq.s32.totalorder %s24, 1
      %p73 = por %p71, %p72
      %p75 = scmp.ne.s32.totalorder %s58, %s74
      %p76 = scmp.eq.s32.totalorder %s24, 0
      %p77 = por %p75, %p76
      %s79 = sadd.s32 %s78, 1
      %p82 = scmp.eq.s32.totalorder %s18, 1
      %p83 = scmp.ne.s32.totalorder %s78, %s80
      %p84 = scmp.eq.s32.totalorder %s18, 0
      %p85 = por %p83, %p84
      %p86 = scmp.ne.s32.totalorder %s78, %s80
      %p87 = scmp.eq.s32.totalorder %s23, 1
      %p88 = por %p86, %p87
      %p89 = scmp.ne.s32.totalorder %s80, %s81
      %p90 = scmp.eq.s32.totalorder %s23, 0
      %p91 = por %p89, %p90
      %p92 = scmp.ne.s32.totalorder %s80, %s81
      %p93 = scmp.eq.s32.totalorder %s24, 1
      %p94 = por %p92, %p93
      %p96 = scmp.ne.s32.totalorder %s81, %s95
      %p97 = scmp.eq.s32.totalorder %s24, 0
      %p98 = por %p96, %p97
      %s100 = sadd.s32 %s99, 1
      %p103 = scmp.eq.s32.totalorder %s18, 1
      %p104 = scmp.ne.s32.totalorder %s99, %s101
      %p105 = scmp.eq.s32.totalorder %s18, 0
      %p106 = por %p104, %p105
      %p107 = scmp.ne.s32.totalorder %s99, %s101
      %p108 = scmp.eq.s32.totalorder %s23, 1
      %p109 = por %p107, %p108
      %p110 = scmp.ne.s32.totalorder %s101, %s102
      %p111 = scmp.eq.s32.totalorder %s23, 0
      %p112 = por %p110, %p111
      %p113 = scmp.ne.s32.totalorder %s101, %s102
      %p114 = scmp.eq.s32.totalorder %s24, 1
      %p115 = por %p113, %p114
      %p117 = scmp.ne.s32.totalorder %s102, %s116
      %p118 = scmp.eq.s32.totalorder %s24, 0
      %p119 = por %p117, %p118
      %s121 = sadd.s32 %s120, 1
      %p124 = scmp.eq.s32.totalorder %s18, 1
      %p125 = scmp.ne.s32.totalorder %s120, %s122
      %p126 = scmp.eq.s32.totalorder %s18, 0
      %p127 = por %p125, %p126
      %p128 = scmp.ne.s32.totalorder %s120, %s122
      %p129 = scmp.eq.s32.totalorder %s23, 1
      %p130 = por %p128, %p129
      %p131 = scmp.ne.s32.totalorder %s122, %s123
      %p132 = scmp.eq.s32.totalorder %s23, 0
      %p133 = por %p131, %p132
      %p134 = scmp.ne.s32.totalorder %s122, %s123
      %p135 = scmp.eq.s32.totalorder %s24, 1
      %p136 = por %p134, %p135
      %p138 = scmp.ne.s32.totalorder %s123, %s137
      %p139 = scmp.eq.s32.totalorder %s24, 0
      %p140 = por %p138, %p139
      %s141 = ssub.s32 %s18, %s25
      %p142 = scmp.eq.s32.totalorder %s141, 0
      %s144 = sadd.s32 %s143, 1
      %s145 = scalar_select %p142, %s143, %s144
      %p148 = pneg %p142
      %p149 = scmp.eq.s32.totalorder %s18, 1
      %p150 = por %p148, %p149
      %p151 = scmp.ne.s32.totalorder %s143, %s146
      %p152 = scmp.eq.s32.totalorder %s18, 0
      %p153 = por %p151, %p152
      %p154 = scmp.ne.s32.totalorder %s143, %s146
      %p155 = scmp.eq.s32.totalorder %s23, 1
      %p156 = por %p154, %p155
      %p157 = scmp.ne.s32.totalorder %s146, %s147
      %p158 = scmp.eq.s32.totalorder %s23, 0
      %p159 = por %p157, %p158
      %p160 = scmp.ne.s32.totalorder %s146, %s147
      %p161 = scmp.eq.s32.totalorder %s24, 1
      %p162 = por %p160, %p161
      %p164 = scmp.ne.s32.totalorder %s147, %s163
      %p165 = scmp.eq.s32.totalorder %s24, 0
      %p166 = por %p164, %p165
      %p167 = scmp.le.s32.totalorder 1, %s18
      %p168 = scmp.lt.s32.totalorder %s18, 3
      %p169 = pnand %p167, %p168
      %p170 = pneg %p169
      // Predicated region
      $region9: #{gat_forward_fused.1} parent=5 // pred_check
        _
      $region10: #{gat_forward_fused.1} parent=5 // pred_check_branch
        %172 = sbr.rel (%p169) target = $region12
      $region11: #{gat_forward_fused.1} parent=5 // pred_region
        %s173 = ssub.s32 %s18, 1
        // Predicated region
        $region13: #{gat_forward_fused.1} parent=11 // pred_check
          %p174 = pneg %p91
        $region14: #{gat_forward_fused.1} parent=11 // pred_check_branch
          %176 = sbr.rel (%p174) target = $region16
        $region15: #{gat_forward_fused.1} parent=11 // pred_region
          %s178 = ssub.s32 4096, 4096
          %179 = vsyncadd [#allocation6], %s178
          %s180 = sshll.u32 [#allocation5], 4
          %s181 = int_to_ptr.vmem [resolvable:$true] %s180
          %186 = dma.hbm_to_vmem [thread:$0]  %s2, 4096, %s181, [#allocation6], 128, 128, 8
        $region16: #{gat_forward_fused.1} parent=11 // pred_fallthru
          _
        // Predicated region
        $region17: #{gat_forward_fused.1} parent=11 // pred_check
          %p187 = pneg %p112
        $region18: #{gat_forward_fused.1} parent=11 // pred_check_branch
          %189 = sbr.rel (%p187) target = $region20
        $region19: #{gat_forward_fused.1} parent=11 // pred_region
          _
        $region20: #{gat_forward_fused.1} parent=11 // pred_fallthru
          _
        // Predicated region
        $region21: #{gat_forward_fused.1} parent=11 // pred_check
          %p190 = pneg %p133
        $region22: #{gat_forward_fused.1} parent=11 // pred_check_branch
          %192 = sbr.rel (%p190) target = $region24
        $region23: #{gat_forward_fused.1} parent=11 // pred_region
          _
        $region24: #{gat_forward_fused.1} parent=11 // pred_fallthru
          _
      $region12: #{gat_forward_fused.1} parent=5 // pred_fallthru
        _
      %p193 = scmp.lt.s32.totalorder %s18, 2
      // Predicated region
      $region25: #{gat_forward_fused.1} parent=5 // pred_check
        %p194 = pneg %p193
      $region26: #{gat_forward_fused.1} parent=5 // pred_check_branch
        %196 = sbr.rel (%p194) target = $region28
      $region27: #{gat_forward_fused.1} parent=5 // pred_region
        // Predicated region
        $region29: #{gat_forward_fused.1} parent=27 // pred_check
          %p197 = pneg %p38
        $region30: #{gat_forward_fused.1} parent=27 // pred_check_branch
          %199 = sbr.rel (%p197) target = $region32
        $region31: #{gat_forward_fused.1} parent=27 // pred_region
          %p200 = scmp.lt.s32.totalorder %s18, 1
          %s201 = scalar_select %p200, %s18, 1
          %s202 = smul.addr %s201, 16
          %s203 = smul.addr %s202, 8
          %s204 = scalar_lea.vmem %s0, %s203
        $region32: #{gat_forward_fused.1} parent=27 // pred_fallthru
          _
        // Predicated region
        $region33: #{gat_forward_fused.1} parent=27 // pred_check
          %p205 = pneg %p64
        $region34: #{gat_forward_fused.1} parent=27 // pred_check_branch
          %207 = sbr.rel (%p205) target = $region36
        $region35: #{gat_forward_fused.1} parent=27 // pred_region
          %s208 = sand.u32 %s54, 1
          %s209 = scalar_lea.sflag [#allocation3], %s208
          %s210 = sand.u32 %s54, 1
          %s211 = smul.addr %s210, 64
          %s212 = scalar_lea.vmem [#allocation2], %s211
          %s214 = ssub.s32 1024, 1024
          %215 = vsyncadd %s209, %s214
          %s216 = smul.addr %s18, 16
          %s217 = smul.addr %s216, 64
          %s218 = scalar_lea.hbm %s1, %s217
          %s219 = sshll.u32 %s212, 4
          %s220 = int_to_ptr.vmem [resolvable:$true] %s219
          %225 = dma.hbm_to_vmem [thread:$0]  %s218, 1024, %s220, %s209, 64, 64, 4
        $region36: #{gat_forward_fused.1} parent=27 // pred_fallthru
          _
      $region28: #{gat_forward_fused.1} parent=5 // pred_fallthru
        _
      %p226 = scmp.le.s32.totalorder 1, %s18
      %p227 = scmp.lt.s32.totalorder %s18, 3
      %p228 = pnand %p226, %p227
      %p229 = pneg %p228
      // Predicated region
      $region37: #{gat_forward_fused.1} parent=5 // pred_check
        _
      $region38: #{gat_forward_fused.1} parent=5 // pred_check_branch
        %231 = sbr.rel (%p228) target = $region40
      $region39: #{gat_forward_fused.1} parent=5 // pred_region
        %s232 = ssub.s32 %s18, 1
        %s233 = sand.u32 %s57, 1
        %s234 = scalar_lea.sflag [#allocation3], %s233
        %s235 = sand.u32 %s57, 1
        %s236 = smul.addr %s235, 64
        %s237 = scalar_lea.vmem [#allocation2], %s236
        // Predicated region
        $region41: #{gat_forward_fused.1} parent=39 // pred_check
          %p238 = pneg %p70
        $region42: #{gat_forward_fused.1} parent=39 // pred_check_branch
          %240 = sbr.rel (%p238) target = $region44
        $region43: #{gat_forward_fused.1} parent=39 // pred_region
          %241 = dma.done %s234, 1024
        $region44: #{gat_forward_fused.1} parent=39 // pred_fallthru
          _
        // Predicated region
        $region45: #{gat_forward_fused.1} parent=39 // pred_check
          %p242 = pneg %p91
        $region46: #{gat_forward_fused.1} parent=39 // pred_check_branch
          %244 = sbr.rel (%p242) target = $region48
        $region47: #{gat_forward_fused.1} parent=39 // pred_region
          %245 = dma.done [#allocation6], 4096
        $region48: #{gat_forward_fused.1} parent=39 // pred_fallthru
          _
        %p246 = scmp.lt.s32.totalorder %s23, 1
        %s247 = scalar_select %p246, %s23, 1
        %s248 = smul.addr %s247, 16
        %s249 = smul.addr %s248, 8
        %s250 = scalar_lea.vmem %s0, %s249
        %p251 = pneg %p44
        %p252 = pneg %p41
        %s253 = sand.u32 %s57, 1
        %s254 = scalar_lea.sflag [#allocation3], %s253
        %s255 = sand.u32 %s57, 1
        %s256 = smul.addr %s255, 64
        %s257 = scalar_lea.vmem [#allocation2], %s256
        %p258 = pneg %p70
        %p259 = pneg %p67
        %p260 = pneg %p91
        %p261 = pneg %p88
        %p262 = pneg %p112
        %p263 = pneg %p109
        %p264 = pneg %p133
        %p265 = pneg %p130
        %p266 = pneg %p159
        %p267 = pneg %p156
        %s268 = sand.u32 %s146, 1
        %s269 = scalar_lea.sflag [#allocation4], %s268
        %s270 = sand.u32 %s146, 1
        %s271 = smul.addr %s270, 128
        %s272 = scalar_lea.vmem [#allocation7], %s271
        %p273 = scmp.lt.s32.totalorder %s23, 1
        %s274 = scalar_select %p273, %s23, 1
        %s275 = smul.addr %s274, 16
        %s276 = smul.addr %s275, 8
        %s277 = scalar_lea.vmem %s0, %s276
        %v278 = vld [vmem:[%s277] sm:$0xff]
        %v279 = vld [vmem:[%s277 + $0x8] sm:$0xff]
        %v280 = vld [vmem:[%s277 + $0x10] sm:$0xff]
        %v281 = vld [vmem:[%s277 + $0x18] sm:$0xff]
        %v282 = vld [vmem:[%s277 + $0x20] sm:$0xff]
        %v283 = vld [vmem:[%s277 + $0x28] sm:$0xff]
        %v284 = vld [vmem:[%s277 + $0x30] sm:$0xff]
        %v285 = vld [vmem:[%s277 + $0x38] sm:$0xff]
        %v286 = vld [vmem:[%s277 + $0x40] sm:$0xff]
        %v287 = vld [vmem:[%s277 + $0x48] sm:$0xff]
        %v288 = vld [vmem:[%s277 + $0x50] sm:$0xff]
        %v289 = vld [vmem:[%s277 + $0x58] sm:$0xff]
        %v290 = vld [vmem:[%s277 + $0x60] sm:$0xff]
        %v291 = vld [vmem:[%s277 + $0x68] sm:$0xff]
        %v292 = vld [vmem:[%s277 + $0x70] sm:$0xff]
        %v293 = vld [vmem:[%s277 + $0x78] sm:$0xff]
        %v294 = vld [vmem:[%s237] sm:$0xf]
        %v295 = vld [vmem:[%s237 + $0x4] sm:$0xf]
        %v296 = vld [vmem:[%s237 + $0x8] sm:$0xf]
        %v297 = vld [vmem:[%s237 + $0xc] sm:$0xf]
        %v298 = vld [vmem:[%s237 + $0x10] sm:$0xf]
        %v299 = vld [vmem:[%s237 + $0x14] sm:$0xf]
        %v300 = vld [vmem:[%s237 + $0x18] sm:$0xf]
        %v301 = vld [vmem:[%s237 + $0x1c] sm:$0xf]
        %v302 = vld [vmem:[%s237 + $0x20] sm:$0xf]
        %v303 = vld [vmem:[%s237 + $0x24] sm:$0xf]
        %v304 = vld [vmem:[%s237 + $0x28] sm:$0xf]
        %v305 = vld [vmem:[%s237 + $0x2c] sm:$0xf]
        %v306 = vld [vmem:[%s237 + $0x30] sm:$0xf]
        %v307 = vld [vmem:[%s237 + $0x34] sm:$0xf]
        %v308 = vld [vmem:[%s237 + $0x38] sm:$0xf]
        %v309 = vld [vmem:[%s237 + $0x3c] sm:$0xf]
        %v310 = vunpack.c.l.bf16 %v294
        %v311 = vunpack.c.l.bf16 %v295
        %v312 = vunpack.c.l.bf16 %v296
        %v313 = vunpack.c.l.bf16 %v297
        %v314 = vunpack.c.l.bf16 %v298
        %v315 = vunpack.c.l.bf16 %v299
        %v316 = vunpack.c.l.bf16 %v300
        %v317 = vunpack.c.l.bf16 %v301
        %v318 = vunpack.c.l.bf16 %v302
        %v319 = vunpack.c.l.bf16 %v303
        %v320 = vunpack.c.l.bf16 %v304
        %v321 = vunpack.c.l.bf16 %v305
        %v322 = vunpack.c.l.bf16 %v306
        %v323 = vunpack.c.l.bf16 %v307
        %v324 = vunpack.c.l.bf16 %v308
        %v325 = vunpack.c.l.bf16 %v309
        %vm326 = vcmp.gt.f32.partialorder %v310, 0.0
        %vm327 = vcmp.gt.f32.partialorder %v311, 0.0
        %vm328 = vcmp.gt.f32.partialorder %v312, 0.0
        %vm329 = vcmp.gt.f32.partialorder %v313, 0.0
        %vm330 = vcmp.gt.f32.partialorder %v314, 0.0
        %vm331 = vcmp.gt.f32.partialorder %v315, 0.0
        %vm332 = vcmp.gt.f32.partialorder %v316, 0.0
        %vm333 = vcmp.gt.f32.partialorder %v317, 0.0
        %vm334 = vcmp.gt.f32.partialorder %v318, 0.0
        %vm335 = vcmp.gt.f32.partialorder %v319, 0.0
        %vm336 = vcmp.gt.f32.partialorder %v320, 0.0
        %vm337 = vcmp.gt.f32.partialorder %v321, 0.0
        %vm338 = vcmp.gt.f32.partialorder %v322, 0.0
        %vm339 = vcmp.gt.f32.partialorder %v323, 0.0
        %vm340 = vcmp.gt.f32.partialorder %v324, 0.0
        %vm341 = vcmp.gt.f32.partialorder %v325, 0.0
        %v342 = vlaneseq
        %v343 = vand.u32 %v342, 127
        %vm344 = vcmp.eq.s32.totalorder %v343, 127
        %v345 = vld [vmem:[#allocation5] sm:$0xff]
        %v346 = vld [vmem:[#allocation5 + $0x8] sm:$0xff]
        %v347 = vld [vmem:[#allocation5 + $0x10] sm:$0xff]
        %v348 = vld [vmem:[#allocation5 + $0x18] sm:$0xff]
        %v349 = vld [vmem:[#allocation5 + $0x20] sm:$0xff]
        %v350 = vld [vmem:[#allocation5 + $0x28] sm:$0xff]
        %v351 = vld [vmem:[#allocation5 + $0x30] sm:$0xff]
        %v352 = vld [vmem:[#allocation5 + $0x38] sm:$0xff]
        %v353 = vld [vmem:[#allocation5 + $0x40] sm:$0xff]
        %v354 = vld [vmem:[#allocation5 + $0x48] sm:$0xff]
        %v355 = vld [vmem:[#allocation5 + $0x50] sm:$0xff]
        %v356 = vld [vmem:[#allocation5 + $0x58] sm:$0xff]
        %v357 = vld [vmem:[#allocation5 + $0x60] sm:$0xff]
        %v358 = vld [vmem:[#allocation5 + $0x68] sm:$0xff]
        %v359 = vld [vmem:[#allocation5 + $0x70] sm:$0xff]
        %v360 = vld [vmem:[#allocation5 + $0x78] sm:$0xff]
        %v361 = vld [vmem:[%s3] sm:$0xff]
        %v362 = vld [vmem:[%s3 + $0x8] sm:$0xff]
        %v363 = vld [vmem:[%s3 + $0x10] sm:$0xff]
        %v364 = vld [vmem:[%s3 + $0x18] sm:$0xff]
        %v365 = vld [vmem:[%s3 + $0x20] sm:$0xff]
        %v366 = vld [vmem:[%s3 + $0x28] sm:$0xff]
        %v367 = vld [vmem:[%s3 + $0x30] sm:$0xff]
        %v368 = vld [vmem:[%s3 + $0x38] sm:$0xff]
        %v369 = vld [vmem:[%s3 + $0x40] sm:$0xff]
        %v370 = vld [vmem:[%s3 + $0x48] sm:$0xff]
        %v371 = vld [vmem:[%s3 + $0x50] sm:$0xff]
        %v372 = vld [vmem:[%s3 + $0x58] sm:$0xff]
        %v373 = vld [vmem:[%s3 + $0x60] sm:$0xff]
        %v374 = vld [vmem:[%s3 + $0x68] sm:$0xff]
        %v375 = vld [vmem:[%s3 + $0x70] sm:$0xff]
        %v376 = vld [vmem:[%s3 + $0x78] sm:$0xff]
        %v377 = vld [vmem:[%s4] sm:$0x1]
        %378 = vmatprep.subr.mxu0 0.0
        %379 = vmatpush1.msra.mxu0 %v360
        %380 = vmatprep.subr.mxu0 0.0
        %381 = vmatpush1.msra.mxu0 %v359
        %382 = vmatprep.subr.mxu0 0.0
        %383 = vmatpush1.msra.mxu0 %v358
        %384 = vmatprep.subr.mxu0 0.0
        %385 = vmatpush1.msra.mxu0 %v357
        %386 = vmatprep.subr.mxu0 0.0
        %387 = vmatpush1.msra.mxu0 %v356
        %388 = vmatprep.subr.mxu0 0.0
        %389 = vmatpush1.msra.mxu0 %v355
        %390 = vmatprep.subr.mxu0 0.0
        %391 = vmatpush1.msra.mxu0 %v354
        %392 = vmatprep.subr.mxu0 0.0
        %393 = vmatpush1.msra.mxu0 %v353
        %394 = vmatprep.subr.mxu0 0.0
        %395 = vmatpush1.msra.mxu0 %v352
        %396 = vmatprep.subr.mxu0 0.0
        %397 = vmatpush1.msra.mxu0 %v351
        %398 = vmatprep.subr.mxu0 0.0
        %399 = vmatpush1.msra.mxu0 %v350
        %400 = vmatprep.subr.mxu0 0.0
        %401 = vmatpush1.msra.mxu0 %v349
        %402 = vmatprep.subr.mxu0 0.0
        %403 = vmatpush1.msra.mxu0 %v348
        %404 = vmatprep.subr.mxu0 0.0
        %405 = vmatpush1.msra.mxu0 %v347
        %406 = vmatprep.subr.mxu0 0.0
        %407 = vmatpush1.msra.mxu0 %v346
        %408 = vmatprep.subr.mxu0 0.0
        %409 = vmatpush1.msra.mxu0 %v345
        %410 = vmatprep.subr.mxu0 0.0
        %411 = vmatpush2.msra.mxu0 0.0
        %412 = vmatprep.subr.mxu0 0.0
        %413 = vmatpush2.msra.mxu0 0.0
        %414 = vmatprep.subr.mxu0 0.0
        %415 = vmatpush2.msra.mxu0 0.0
        %416 = vmatprep.subr.mxu0 0.0
        %417 = vmatpush2.msra.mxu0 0.0
        %418 = vmatprep.subr.mxu0 0.0
        %419 = vmatpush2.msra.mxu0 0.0
        %420 = vmatprep.subr.mxu0 0.0
        %421 = vmatpush2.msra.mxu0 0.0
        %422 = vmatprep.subr.mxu0 0.0
        %423 = vmatpush2.msra.mxu0 0.0
        %424 = vmatprep.subr.mxu0 0.0
        %425 = vmatpush2.msra.mxu0 0.0
        %426 = vmatprep.subr.mxu0 0.0
        %427 = vmatpush2.msra.mxu0 0.0
        %428 = vmatprep.subr.mxu0 0.0
        %429 = vmatpush2.msra.mxu0 0.0
        %430 = vmatprep.subr.mxu0 0.0
        %431 = vmatpush2.msra.mxu0 0.0
        %432 = vmatprep.subr.mxu0 0.0
        %433 = vmatpush2.msra.mxu0 0.0
        %434 = vmatprep.subr.mxu0 0.0
        %435 = vmatpush2.msra.mxu0 0.0
        %436 = vmatprep.subr.mxu0 0.0
        %437 = vmatpush2.msra.mxu0 0.0
        %438 = vmatprep.subr.mxu0 0.0
        %439 = vmatpush2.msra.mxu0 0.0
        %440 = vmatprep.subr.mxu0 0.0
        %441 = vmatpush2.msra.mxu0 0.0
        %442 = vmatprep.mubr.f32.mxu0 0.0
        %443 = vmatmul.mubr.f32.gmra.mxu0 %v278
        %v444 = vpop.f32.mrf.mxu0
        %v445 = vadd.f32 0.0, %v444
        %v446 = vpop.f32.mrf.mxu0
        %447 = vmatprep.mubr.f32.mxu0 0.0
        %448 = vmatmul.mubr.f32.gmra.mxu0 %v279
        %v449 = vpop.f32.mrf.mxu0
        %v450 = vadd.f32 0.0, %v449
        %v451 = vpop.f32.mrf.mxu0
        %452 = vmatprep.mubr.f32.mxu0 0.0
        %453 = vmatmul.mubr.f32.gmra.mxu0 %v280
        %v454 = vpop.f32.mrf.mxu0
        %v455 = vadd.f32 0.0, %v454
        %v456 = vpop.f32.mrf.mxu0
        %457 = vmatprep.mubr.f32.mxu0 0.0
        %458 = vmatmul.mubr.f32.gmra.mxu0 %v281
        %v459 = vpop.f32.mrf.mxu0
        %v460 = vadd.f32 0.0, %v459
        %v461 = vpop.f32.mrf.mxu0
        %462 = vmatprep.mubr.f32.mxu0 0.0
        %463 = vmatmul.mubr.f32.gmra.mxu0 %v282
        %v464 = vpop.f32.mrf.mxu0
        %v465 = vadd.f32 0.0, %v464
        %v466 = vpop.f32.mrf.mxu0
        %467 = vmatprep.mubr.f32.mxu0 0.0
        %468 = vmatmul.mubr.f32.gmra.mxu0 %v283
        %v469 = vpop.f32.mrf.mxu0
        %v470 = vadd.f32 0.0, %v469
        %v471 = vpop.f32.mrf.mxu0
        %472 = vmatprep.mubr.f32.mxu0 0.0
        %473 = vmatmul.mubr.f32.gmra.mxu0 %v284
        %v474 = vpop.f32.mrf.mxu0
        %v475 = vadd.f32 0.0, %v474
        %v476 = vpop.f32.mrf.mxu0
        %477 = vmatprep.mubr.f32.mxu0 0.0
        %478 = vmatmul.mubr.f32.gmra.mxu0 %v285
        %v479 = vpop.f32.mrf.mxu0
        %v480 = vadd.f32 0.0, %v479
        %v481 = vpop.f32.mrf.mxu0
        %482 = vmatprep.mubr.f32.mxu0 0.0
        %483 = vmatmul.mubr.f32.gmra.mxu0 %v286
        %v484 = vpop.f32.mrf.mxu0
        %v485 = vadd.f32 0.0, %v484
        %v486 = vpop.f32.mrf.mxu0
        %487 = vmatprep.mubr.f32.mxu0 0.0
        %488 = vmatmul.mubr.f32.gmra.mxu0 %v287
        %v489 = vpop.f32.mrf.mxu0
        %v490 = vadd.f32 0.0, %v489
        %v491 = vpop.f32.mrf.mxu0
        %492 = vmatprep.mubr.f32.mxu0 0.0
        %493 = vmatmul.mubr.f32.gmra.mxu0 %v288
        %v494 = vpop.f32.mrf.mxu0
        %v495 = vadd.f32 0.0, %v494
        %v496 = vpop.f32.mrf.mxu0
        %497 = vmatprep.mubr.f32.mxu0 0.0
        %498 = vmatmul.mubr.f32.gmra.mxu0 %v289
        %v499 = vpop.f32.mrf.mxu0
        %v500 = vadd.f32 0.0, %v499
        %v501 = vpop.f32.mrf.mxu0
        %502 = vmatprep.mubr.f32.mxu0 0.0
        %503 = vmatmul.mubr.f32.gmra.mxu0 %v290
        %v504 = vpop.f32.mrf.mxu0
        %v505 = vadd.f32 0.0, %v504
        %v506 = vpop.f32.mrf.mxu0
        %507 = vmatprep.mubr.f32.mxu0 0.0
        %508 = vmatmul.mubr.f32.gmra.mxu0 %v291
        %v509 = vpop.f32.mrf.mxu0
        %v510 = vadd.f32 0.0, %v509
        %v511 = vpop.f32.mrf.mxu0
        %512 = vmatprep.mubr.f32.mxu0 0.0
        %513 = vmatmul.mubr.f32.gmra.mxu0 %v292
        %v514 = vpop.f32.mrf.mxu0
        %v515 = vadd.f32 0.0, %v514
        %v516 = vpop.f32.mrf.mxu0
        %517 = vmatprep.mubr.f32.mxu0 0.0
        %518 = vmatmul.mubr.f32.gmra.mxu0 %v293
        %v519 = vpop.f32.mrf.mxu0
        %v520 = vadd.f32 0.0, %v519
        %v521 = vpop.f32.mrf.mxu0
        %522 = vdwg.mxu0
        %523 = vmatprep.subr.mxu0 0.0
        %524 = vmatpush1.msra.mxu0 %v376
        %525 = vmatprep.subr.mxu0 0.0
        %526 = vmatpush1.msra.mxu0 %v375
        %527 = vmatprep.subr.mxu0 0.0
        %528 = vmatpush1.msra.mxu0 %v374
        %529 = vmatprep.subr.mxu0 0.0
        %530 = vmatpush1.msra.mxu0 %v373
        %531 = vmatprep.subr.mxu0 0.0
        %532 = vmatpush1.msra.mxu0 %v372
        %533 = vmatprep.subr.mxu0 0.0
        %534 = vmatpush1.msra.mxu0 %v371
        %535 = vmatprep.subr.mxu0 0.0
        %536 = vmatpush1.msra.mxu0 %v370
        %537 = vmatprep.subr.mxu0 0.0
        %538 = vmatpush1.msra.mxu0 %v369
        %539 = vmatprep.subr.mxu0 0.0
        %540 = vmatpush1.msra.mxu0 %v368
        %541 = vmatprep.subr.mxu0 0.0
        %542 = vmatpush1.msra.mxu0 %v367
        %543 = vmatprep.subr.mxu0 0.0
        %544 = vmatpush1.msra.mxu0 %v366
        %545 = vmatprep.subr.mxu0 0.0
        %546 = vmatpush1.msra.mxu0 %v365
        %547 = vmatprep.subr.mxu0 0.0
        %548 = vmatpush1.msra.mxu0 %v364
        %549 = vmatprep.subr.mxu0 0.0
        %550 = vmatpush1.msra.mxu0 %v363
        %551 = vmatprep.subr.mxu0 0.0
        %552 = vmatpush1.msra.mxu0 %v362
        %553 = vmatprep.subr.mxu0 0.0
        %554 = vmatpush1.msra.mxu0 %v361
        %555 = vmatprep.subr.mxu0 0.0
        %556 = vmatpush2.msra.mxu0 0.0
        %557 = vmatprep.subr.mxu0 0.0
        %558 = vmatpush2.msra.mxu0 0.0
        %559 = vmatprep.subr.mxu0 0.0
        %560 = vmatpush2.msra.mxu0 0.0
        %561 = vmatprep.subr.mxu0 0.0
        %562 = vmatpush2.msra.mxu0 0.0
        %563 = vmatprep.subr.mxu0 0.0
        %564 = vmatpush2.msra.mxu0 0.0
        %565 = vmatprep.subr.mxu0 0.0
        %566 = vmatpush2.msra.mxu0 0.0
        %567 = vmatprep.subr.mxu0 0.0
        %568 = vmatpush2.msra.mxu0 0.0
        %569 = vmatprep.subr.mxu0 0.0
        %570 = vmatpush2.msra.mxu0 0.0
        %571 = vmatprep.subr.mxu0 0.0
        %572 = vmatpush2.msra.mxu0 0.0
        %573 = vmatprep.subr.mxu0 0.0
        %574 = vmatpush2.msra.mxu0 0.0
        %575 = vmatprep.subr.mxu0 0.0
        %576 = vmatpush2.msra.mxu0 0.0
        %577 = vmatprep.subr.mxu0 0.0
        %578 = vmatpush2.msra.mxu0 0.0
        %579 = vmatprep.subr.mxu0 0.0
        %580 = vmatpush2.msra.mxu0 0.0
        %581 = vmatprep.subr.mxu0 0.0
        %582 = vmatpush2.msra.mxu0 0.0
        %583 = vmatprep.subr.mxu0 0.0
        %584 = vmatpush2.msra.mxu0 0.0
        %585 = vmatprep.subr.mxu0 0.0
        %586 = vmatpush2.msra.mxu0 0.0
        %587 = vmatprep.mubr.f32.mxu0 0.0
        %588 = vmatmul.mubr.f32.gmra.mxu0 %v278
        %v589 = vpop.f32.mrf.mxu0
        %v590 = vadd.f32 0.0, %v589
        %v591 = vpop.f32.mrf.mxu0
        %592 = vmatprep.mubr.f32.mxu0 0.0
        %593 = vmatmul.mubr.f32.gmra.mxu0 %v279
        %v594 = vpop.f32.mrf.mxu0
        %v595 = vadd.f32 0.0, %v594
        %v596 = vpop.f32.mrf.mxu0
        %597 = vmatprep.mubr.f32.mxu0 0.0
        %598 = vmatmul.mubr.f32.gmra.mxu0 %v280
        %v599 = vpop.f32.mrf.mxu0
        %v600 = vadd.f32 0.0, %v599
        %v601 = vpop.f32.mrf.mxu0
        %602 = vmatprep.mubr.f32.mxu0 0.0
        %603 = vmatmul.mubr.f32.gmra.mxu0 %v281
        %v604 = vpop.f32.mrf.mxu0
        %v605 = vadd.f32 0.0, %v604
        %v606 = vpop.f32.mrf.mxu0
        %607 = vmatprep.mubr.f32.mxu0 0.0
        %608 = vmatmul.mubr.f32.gmra.mxu0 %v282
        %v609 = vpop.f32.mrf.mxu0
        %v610 = vadd.f32 0.0, %v609
        %v611 = vpop.f32.mrf.mxu0
        %612 = vmatprep.mubr.f32.mxu0 0.0
        %613 = vmatmul.mubr.f32.gmra.mxu0 %v283
        %v614 = vpop.f32.mrf.mxu0
        %v615 = vadd.f32 0.0, %v614
        %v616 = vpop.f32.mrf.mxu0
        %617 = vmatprep.mubr.f32.mxu0 0.0
        %618 = vmatmul.mubr.f32.gmra.mxu0 %v284
        %v619 = vpop.f32.mrf.mxu0
        %v620 = vadd.f32 0.0, %v619
        %v621 = vpop.f32.mrf.mxu0
        %622 = vmatprep.mubr.f32.mxu0 0.0
        %623 = vmatmul.mubr.f32.gmra.mxu0 %v285
        %v624 = vpop.f32.mrf.mxu0
        %v625 = vadd.f32 0.0, %v624
        %v626 = vpop.f32.mrf.mxu0
        %627 = vmatprep.mubr.f32.mxu0 0.0
        %628 = vmatmul.mubr.f32.gmra.mxu0 %v286
        %v629 = vpop.f32.mrf.mxu0
        %v630 = vadd.f32 0.0, %v629
        %v631 = vpop.f32.mrf.mxu0
        %632 = vmatprep.mubr.f32.mxu0 0.0
        %633 = vmatmul.mubr.f32.gmra.mxu0 %v287
        %v634 = vpop.f32.mrf.mxu0
        %v635 = vadd.f32 0.0, %v634
        %v636 = vpop.f32.mrf.mxu0
        %637 = vmatprep.mubr.f32.mxu0 0.0
        %638 = vmatmul.mubr.f32.gmra.mxu0 %v288
        %v639 = vpop.f32.mrf.mxu0
        %v640 = vadd.f32 0.0, %v639
        %v641 = vpop.f32.mrf.mxu0
        %642 = vmatprep.mubr.f32.mxu0 0.0
        %643 = vmatmul.mubr.f32.gmra.mxu0 %v289
        %v644 = vpop.f32.mrf.mxu0
        %v645 = vadd.f32 0.0, %v644
        %v646 = vpop.f32.mrf.mxu0
        %647 = vmatprep.mubr.f32.mxu0 0.0
        %648 = vmatmul.mubr.f32.gmra.mxu0 %v290
        %v649 = vpop.f32.mrf.mxu0
        %v650 = vadd.f32 0.0, %v649
        %v651 = vpop.f32.mrf.mxu0
        %652 = vmatprep.mubr.f32.mxu0 0.0
        %653 = vmatmul.mubr.f32.gmra.mxu0 %v291
        %v654 = vpop.f32.mrf.mxu0
        %v655 = vadd.f32 0.0, %v654
        %v656 = vpop.f32.mrf.mxu0
        %657 = vmatprep.mubr.f32.mxu0 0.0
        %658 = vmatmul.mubr.f32.gmra.mxu0 %v292
        %v659 = vpop.f32.mrf.mxu0
        %v660 = vadd.f32 0.0, %v659
        %v661 = vpop.f32.mrf.mxu0
        %662 = vmatprep.mubr.f32.mxu0 0.0
        %663 = vmatmul.mubr.f32.gmra.mxu0 %v293
        %v664 = vpop.f32.mrf.mxu0
        %v665 = vadd.f32 0.0, %v664
        %v666 = vpop.f32.mrf.mxu0
        %667 = vdwg.mxu0
        %668 = vmatprep.subr.mxu0 0.0
        %669 = vmatpush1.xpose.msra.mxu0 %v293
        %670 = vmatprep.subr.mxu0 0.0
        %671 = vmatpush1.xpose.msra.mxu0 %v292
        %672 = vmatprep.subr.mxu0 0.0
        %673 = vmatpush1.xpose.msra.mxu0 %v291
        %674 = vmatprep.subr.mxu0 0.0
        %675 = vmatpush1.xpose.msra.mxu0 %v290
        %676 = vmatprep.subr.mxu0 0.0
        %677 = vmatpush1.xpose.msra.mxu0 %v289
        %678 = vmatprep.subr.mxu0 0.0
        %679 = vmatpush1.xpose.msra.mxu0 %v288
        %680 = vmatprep.subr.mxu0 0.0
        %681 = vmatpush1.xpose.msra.mxu0 %v287
        %682 = vmatprep.subr.mxu0 0.0
        %683 = vmatpush1.xpose.msra.mxu0 %v286
        %684 = vmatprep.subr.mxu0 0.0
        %685 = vmatpush1.xpose.msra.mxu0 %v285
        %686 = vmatprep.subr.mxu0 0.0
        %687 = vmatpush1.xpose.msra.mxu0 %v284
        %688 = vmatprep.subr.mxu0 0.0
        %689 = vmatpush1.xpose.msra.mxu0 %v283
        %690 = vmatprep.subr.mxu0 0.0
        %691 = vmatpush1.xpose.msra.mxu0 %v282
        %692 = vmatprep.subr.mxu0 0.0
        %693 = vmatpush1.xpose.msra.mxu0 %v281
        %694 = vmatprep.subr.mxu0 0.0
        %695 = vmatpush1.xpose.msra.mxu0 %v280
        %696 = vmatprep.subr.mxu0 0.0
        %697 = vmatpush1.xpose.msra.mxu0 %v279
        %698 = vmatprep.subr.mxu0 0.0
        %699 = vmatpush1.xpose.msra.mxu0 %v278
        %700 = vmatprep.subr.mxu0 0.0
        %701 = vmatpush2.xpose.msra.mxu0 0.0
        %702 = vmatprep.subr.mxu0 0.0
        %703 = vmatpush2.xpose.msra.mxu0 0.0
        %704 = vmatprep.subr.mxu0 0.0
        %705 = vmatpush2.xpose.msra.mxu0 0.0
        %706 = vmatprep.subr.mxu0 0.0
        %707 = vmatpush2.xpose.msra.mxu0 0.0
        %708 = vmatprep.subr.mxu0 0.0
        %709 = vmatpush2.xpose.msra.mxu0 0.0
        %710 = vmatprep.subr.mxu0 0.0
        %711 = vmatpush2.xpose.msra.mxu0 0.0
        %712 = vmatprep.subr.mxu0 0.0
        %713 = vmatpush2.xpose.msra.mxu0 0.0
        %714 = vmatprep.subr.mxu0 0.0
        %715 = vmatpush2.xpose.msra.mxu0 0.0
        %716 = vmatprep.subr.mxu0 0.0
        %717 = vmatpush2.xpose.msra.mxu0 0.0
        %718 = vmatprep.subr.mxu0 0.0
        %719 = vmatpush2.xpose.msra.mxu0 0.0
        %720 = vmatprep.subr.mxu0 0.0
        %721 = vmatpush2.xpose.msra.mxu0 0.0
        %722 = vmatprep.subr.mxu0 0.0
        %723 = vmatpush2.xpose.msra.mxu0 0.0
        %724 = vmatprep.subr.mxu0 0.0
        %725 = vmatpush2.xpose.msra.mxu0 0.0
        %726 = vmatprep.subr.mxu0 0.0
        %727 = vmatpush2.xpose.msra.mxu0 0.0
        %728 = vmatprep.subr.mxu0 0.0
        %729 = vmatpush2.xpose.msra.mxu0 0.0
        %730 = vmatprep.subr.mxu0 0.0
        %731 = vmatpush2.xpose.msra.mxu0 0.0
        %732 = vmatprep.mubr.f32.mxu0 0.0
        %733 = vmatmul.mubr.f32.gmra.mxu0 %v377
        %v734 = vpop.f32.mrf.mxu0
        %v735 = vadd.f32 0.0, %v734
        %v736 = vpop.f32.mrf.mxu0
        %737 = vdwg.mxu0
        %739 = vset.pattern.permute.xlu0 0
        %740 = vperm.xlu0 %739, %v590
        %v741 = vpop.permute.xlu0 %740
        %744 = vset.pattern.permute.xlu0 0
        %745 = vperm.xlu0 %744, %v595
        %v746 = vpop.permute.xlu0 %745
        %749 = vset.pattern.permute.xlu0 0
        %750 = vperm.xlu0 %749, %v600
        %v751 = vpop.permute.xlu0 %750
        %754 = vset.pattern.permute.xlu0 0
        %755 = vperm.xlu0 %754, %v605
        %v756 = vpop.permute.xlu0 %755
        %759 = vset.pattern.permute.xlu0 0
        %760 = vperm.xlu0 %759, %v610
        %v761 = vpop.permute.xlu0 %760
        %764 = vset.pattern.permute.xlu0 0
        %765 = vperm.xlu0 %764, %v615
        %v766 = vpop.permute.xlu0 %765
        %769 = vset.pattern.permute.xlu0 0
        %770 = vperm.xlu0 %769, %v620
        %v771 = vpop.permute.xlu0 %770
        %774 = vset.pattern.permute.xlu0 0
        %775 = vperm.xlu0 %774, %v625
        %v776 = vpop.permute.xlu0 %775
        %779 = vset.pattern.permute.xlu0 0
        %780 = vperm.xlu0 %779, %v630
        %v781 = vpop.permute.xlu0 %780
        %784 = vset.pattern.permute.xlu0 0
        %785 = vperm.xlu0 %784, %v635
        %v786 = vpop.permute.xlu0 %785
        %789 = vset.pattern.permute.xlu0 0
        %790 = vperm.xlu0 %789, %v640
        %v791 = vpop.permute.xlu0 %790
        %794 = vset.pattern.permute.xlu0 0
        %795 = vperm.xlu0 %794, %v645
        %v796 = vpop.permute.xlu0 %795
        %799 = vset.pattern.permute.xlu0 0
        %800 = vperm.xlu0 %799, %v650
        %v801 = vpop.permute.xlu0 %800
        %804 = vset.pattern.permute.xlu0 0
        %805 = vperm.xlu0 %804, %v655
        %v806 = vpop.permute.xlu0 %805
        %809 = vset.pattern.permute.xlu0 0
        %810 = vperm.xlu0 %809, %v660
        %v811 = vpop.permute.xlu0 %810
        %814 = vset.pattern.permute.xlu0 0
        %815 = vperm.xlu0 %814, %v665
        %v816 = vpop.permute.xlu0 %815
        %v818 = vlaneseq
        %v819 = vshrl.u32 %v818, 7
        %v820 = vsub.s32 0, %v819
        %v821 = vrot.slane %v735, %v820
        %v822 = vadd.f32 %v741, %v821
        %v823 = vadd.f32 %v746, %v821
        %v824 = vadd.f32 %v751, %v821
        %v825 = vadd.f32 %v756, %v821
        %v826 = vadd.f32 %v761, %v821
        %v827 = vadd.f32 %v766, %v821
        %v828 = vadd.f32 %v771, %v821
        %v829 = vadd.f32 %v776, %v821
        %v830 = vadd.f32 %v781, %v821
        %v831 = vadd.f32 %v786, %v821
        %v832 = vadd.f32 %v791, %v821
        %v833 = vadd.f32 %v796, %v821
        %v834 = vadd.f32 %v801, %v821
        %v835 = vadd.f32 %v806, %v821
        %v836 = vadd.f32 %v811, %v821
        %v837 = vadd.f32 %v816, %v821
        %vm838 = vcmp.gt.f32.partialorder %v822, 0.0
        %vm839 = vcmp.gt.f32.partialorder %v823, 0.0
        %vm840 = vcmp.gt.f32.partialorder %v824, 0.0
        %vm841 = vcmp.gt.f32.partialorder %v825, 0.0
        %vm842 = vcmp.gt.f32.partialorder %v826, 0.0
        %vm843 = vcmp.gt.f32.partialorder %v827, 0.0
        %vm844 = vcmp.gt.f32.partialorder %v828, 0.0
        %vm845 = vcmp.gt.f32.partialorder %v829, 0.0
        %vm846 = vcmp.gt.f32.partialorder %v830, 0.0
        %vm847 = vcmp.gt.f32.partialorder %v831, 0.0
        %vm848 = vcmp.gt.f32.partialorder %v832, 0.0
        %vm849 = vcmp.gt.f32.partialorder %v833, 0.0
        %vm850 = vcmp.gt.f32.partialorder %v834, 0.0
        %vm851 = vcmp.gt.f32.partialorder %v835, 0.0
        %vm852 = vcmp.gt.f32.partialorder %v836, 0.0
        %vm853 = vcmp.gt.f32.partialorder %v837, 0.0
        %v854 = vmul.f32 %v822, 0.2
        %v855 = vmul.f32 %v823, 0.2
        %v856 = vmul.f32 %v824, 0.2
        %v857 = vmul.f32 %v825, 0.2
        %v858 = vmul.f32 %v826, 0.2
        %v859 = vmul.f32 %v827, 0.2
        %v860 = vmul.f32 %v828, 0.2
        %v861 = vmul.f32 %v829, 0.2
        %v862 = vmul.f32 %v830, 0.2
        %v863 = vmul.f32 %v831, 0.2
        %v864 = vmul.f32 %v832, 0.2
        %v865 = vmul.f32 %v833, 0.2
        %v866 = vmul.f32 %v834, 0.2
        %v867 = vmul.f32 %v835, 0.2
        %v868 = vmul.f32 %v836, 0.2
        %v869 = vmul.f32 %v837, 0.2
        %v870 = vsel %vm838, %v822, %v854
        %v871 = vsel %vm839, %v823, %v855
        %v872 = vsel %vm840, %v824, %v856
        %v873 = vsel %vm841, %v825, %v857
        %v874 = vsel %vm842, %v826, %v858
        %v875 = vsel %vm843, %v827, %v859
        %v876 = vsel %vm844, %v828, %v860
        %v877 = vsel %vm845, %v829, %v861
        %v878 = vsel %vm846, %v830, %v862
        %v879 = vsel %vm847, %v831, %v863
        %v880 = vsel %vm848, %v832, %v864
        %v881 = vsel %vm849, %v833, %v865
        %v882 = vsel %vm850, %v834, %v866
        %v883 = vsel %vm851, %v835, %v867
        %v884 = vsel %vm852, %v836, %v868
        %v885 = vsel %vm853, %v837, %v869
        %v886 = vsub.f32 0.0, %v870
        %v887 = vsub.f32 0.0, %v871
        %v888 = vsub.f32 0.0, %v872
        %v889 = vsub.f32 0.0, %v873
        %v890 = vsub.f32 0.0, %v874
        %v891 = vsub.f32 0.0, %v875
        %v892 = vsub.f32 0.0, %v876
        %v893 = vsub.f32 0.0, %v877
        %v894 = vsub.f32 0.0, %v878
        %v895 = vsub.f32 0.0, %v879
        %v896 = vsub.f32 0.0, %v880
        %v897 = vsub.f32 0.0, %v881
        %v898 = vsub.f32 0.0, %v882
        %v899 = vsub.f32 0.0, %v883
        %v900 = vsub.f32 0.0, %v884
        %v901 = vsub.f32 0.0, %v885
        %v902 = vmul.f32 %v886, 1.442695
        %v903 = vpow.pop %v902
        %v904 = vmul.f32 %v887, 1.442695
        %v905 = vpow.pop %v904
        %v906 = vmul.f32 %v888, 1.442695
        %v907 = vpow.pop %v906
        %v908 = vmul.f32 %v889, 1.442695
        %v909 = vpow.pop %v908
        %v910 = vmul.f32 %v890, 1.442695
        %v911 = vpow.pop %v910
        %v912 = vmul.f32 %v891, 1.442695
        %v913 = vpow.pop %v912
        %v914 = vmul.f32 %v892, 1.442695
        %v915 = vpow.pop %v914
        %v916 = vmul.f32 %v893, 1.442695
        %v917 = vpow.pop %v916
        %v918 = vmul.f32 %v894, 1.442695
        %v919 = vpow.pop %v918
        %v920 = vmul.f32 %v895, 1.442695
        %v921 = vpow.pop %v920
        %v922 = vmul.f32 %v896, 1.442695
        %v923 = vpow.pop %v922
        %v924 = vmul.f32 %v897, 1.442695
        %v925 = vpow.pop %v924
        %v926 = vmul.f32 %v898, 1.442695
        %v927 = vpow.pop %v926
        %v928 = vmul.f32 %v899, 1.442695
        %v929 = vpow.pop %v928
        %v930 = vmul.f32 %v900, 1.442695
        %v931 = vpow.pop %v930
        %v932 = vmul.f32 %v901, 1.442695
        %v933 = vpow.pop %v932
        %v934 = vsel %vm326, %v903, 0.0
        %v935 = vsel %vm327, %v905, 0.0
        %v936 = vsel %vm328, %v907, 0.0
        %v937 = vsel %vm329, %v909, 0.0
        %v938 = vsel %vm330, %v911, 0.0
        %v939 = vsel %vm331, %v913, 0.0
        %v940 = vsel %vm332, %v915, 0.0
        %v941 = vsel %vm333, %v917, 0.0
        %v942 = vsel %vm334, %v919, 0.0
        %v943 = vsel %vm335, %v921, 0.0
        %v944 = vsel %vm336, %v923, 0.0
        %v945 = vsel %vm337, %v925, 0.0
        %v946 = vsel %vm338, %v927, 0.0
        %v947 = vsel %vm339, %v929, 0.0
        %v948 = vsel %vm340, %v931, 0.0
        %v949 = vsel %vm341, %v933, 0.0
        %v950 = vsel %vm344, 1.0, %v445
        %v951 = vsel %vm344, 1.0, %v450
        %v952 = vsel %vm344, 1.0, %v455
        %v953 = vsel %vm344, 1.0, %v460
        %v954 = vsel %vm344, 1.0, %v465
        %v955 = vsel %vm344, 1.0, %v470
        %v956 = vsel %vm344, 1.0, %v475
        %v957 = vsel %vm344, 1.0, %v480
        %v958 = vsel %vm344, 1.0, %v485
        %v959 = vsel %vm344, 1.0, %v490
        %v960 = vsel %vm344, 1.0, %v495
        %v961 = vsel %vm344, 1.0, %v500
        %v962 = vsel %vm344, 1.0, %v505
        %v963 = vsel %vm344, 1.0, %v510
        %v964 = vsel %vm344, 1.0, %v515
        %v965 = vsel %vm344, 1.0, %v520
        %966 = vmatprep.subr.mxu0 0.0
        %967 = vmatpush1.msra.mxu0 %v965
        %968 = vmatprep.subr.mxu0 0.0
        %969 = vmatpush1.msra.mxu0 %v964
        %970 = vmatprep.subr.mxu0 0.0
        %971 = vmatpush1.msra.mxu0 %v963
        %972 = vmatprep.subr.mxu0 0.0
        %973 = vmatpush1.msra.mxu0 %v962
        %974 = vmatprep.subr.mxu0 0.0
        %975 = vmatpush1.msra.mxu0 %v961
        %976 = vmatprep.subr.mxu0 0.0
        %977 = vmatpush1.msra.mxu0 %v960
        %978 = vmatprep.subr.mxu0 0.0
        %979 = vmatpush1.msra.mxu0 %v959
        %980 = vmatprep.subr.mxu0 0.0
        %981 = vmatpush1.msra.mxu0 %v958
        %982 = vmatprep.subr.mxu0 0.0
        %983 = vmatpush1.msra.mxu0 %v957
        %984 = vmatprep.subr.mxu0 0.0
        %985 = vmatpush1.msra.mxu0 %v956
        %986 = vmatprep.subr.mxu0 0.0
        %987 = vmatpush1.msra.mxu0 %v955
        %988 = vmatprep.subr.mxu0 0.0
        %989 = vmatpush1.msra.mxu0 %v954
        %990 = vmatprep.subr.mxu0 0.0
        %991 = vmatpush1.msra.mxu0 %v953
        %992 = vmatprep.subr.mxu0 0.0
        %993 = vmatpush1.msra.mxu0 %v952
        %994 = vmatprep.subr.mxu0 0.0
        %995 = vmatpush1.msra.mxu0 %v951
        %996 = vmatprep.subr.mxu0 0.0
        %997 = vmatpush1.msra.mxu0 %v950
        %998 = vmatprep.subr.mxu0 0.0
        %999 = vmatpush2.msra.mxu0 0.0
        %1000 = vmatprep.subr.mxu0 0.0
        %1001 = vmatpush2.msra.mxu0 0.0
        %1002 = vmatprep.subr.mxu0 0.0
        %1003 = vmatpush2.msra.mxu0 0.0
        %1004 = vmatprep.subr.mxu0 0.0
        %1005 = vmatpush2.msra.mxu0 0.0
        %1006 = vmatprep.subr.mxu0 0.0
        %1007 = vmatpush2.msra.mxu0 0.0
        %1008 = vmatprep.subr.mxu0 0.0
        %1009 = vmatpush2.msra.mxu0 0.0
        %1010 = vmatprep.subr.mxu0 0.0
        %1011 = vmatpush2.msra.mxu0 0.0
        %1012 = vmatprep.subr.mxu0 0.0
        %1013 = vmatpush2.msra.mxu0 0.0
        %1014 = vmatprep.subr.mxu0 0.0
        %1015 = vmatpush2.msra.mxu0 0.0
        %1016 = vmatprep.subr.mxu0 0.0
        %1017 = vmatpush2.msra.mxu0 0.0
        %1018 = vmatprep.subr.mxu0 0.0
        %1019 = vmatpush2.msra.mxu0 0.0
        %1020 = vmatprep.subr.mxu0 0.0
        %1021 = vmatpush2.msra.mxu0 0.0
        %1022 = vmatprep.subr.mxu0 0.0
        %1023 = vmatpush2.msra.mxu0 0.0
        %1024 = vmatprep.subr.mxu0 0.0
        %1025 = vmatpush2.msra.mxu0 0.0
        %1026 = vmatprep.subr.mxu0 0.0
        %1027 = vmatpush2.msra.mxu0 0.0
        %1028 = vmatprep.subr.mxu0 0.0
        %1029 = vmatpush2.msra.mxu0 0.0
        %1030 = vmatprep.mubr.f32.mxu0 0.0
        %1031 = vmatmul.mubr.f32.gmra.mxu0 %v934
        %v1032 = vpop.f32.mrf.mxu0
        %v1033 = vadd.f32 0.0, %v1032
        %v1034 = vpop.f32.mrf.mxu0
        %1035 = vmatprep.mubr.f32.mxu0 0.0
        %1036 = vmatmul.mubr.f32.gmra.mxu0 %v935
        %v1037 = vpop.f32.mrf.mxu0
        %v1038 = vadd.f32 0.0, %v1037
        %v1039 = vpop.f32.mrf.mxu0
        %1040 = vmatprep.mubr.f32.mxu0 0.0
        %1041 = vmatmul.mubr.f32.gmra.mxu0 %v936
        %v1042 = vpop.f32.mrf.mxu0
        %v1043 = vadd.f32 0.0, %v1042
        %v1044 = vpop.f32.mrf.mxu0
        %1045 = vmatprep.mubr.f32.mxu0 0.0
        %1046 = vmatmul.mubr.f32.gmra.mxu0 %v937
        %v1047 = vpop.f32.mrf.mxu0
        %v1048 = vadd.f32 0.0, %v1047
        %v1049 = vpop.f32.mrf.mxu0
        %1050 = vmatprep.mubr.f32.mxu0 0.0
        %1051 = vmatmul.mubr.f32.gmra.mxu0 %v938
        %v1052 = vpop.f32.mrf.mxu0
        %v1053 = vadd.f32 0.0, %v1052
        %v1054 = vpop.f32.mrf.mxu0
        %1055 = vmatprep.mubr.f32.mxu0 0.0
        %1056 = vmatmul.mubr.f32.gmra.mxu0 %v939
        %v1057 = vpop.f32.mrf.mxu0
        %v1058 = vadd.f32 0.0, %v1057
        %v1059 = vpop.f32.mrf.mxu0
        %1060 = vmatprep.mubr.f32.mxu0 0.0
        %1061 = vmatmul.mubr.f32.gmra.mxu0 %v940
        %v1062 = vpop.f32.mrf.mxu0
        %v1063 = vadd.f32 0.0, %v1062
        %v1064 = vpop.f32.mrf.mxu0
        %1065 = vmatprep.mubr.f32.mxu0 0.0
        %1066 = vmatmul.mubr.f32.gmra.mxu0 %v941
        %v1067 = vpop.f32.mrf.mxu0
        %v1068 = vadd.f32 0.0, %v1067
        %v1069 = vpop.f32.mrf.mxu0
        %1070 = vmatprep.mubr.f32.mxu0 0.0
        %1071 = vmatmul.mubr.f32.gmra.mxu0 %v942
        %v1072 = vpop.f32.mrf.mxu0
        %v1073 = vadd.f32 0.0, %v1072
        %v1074 = vpop.f32.mrf.mxu0
        %1075 = vmatprep.mubr.f32.mxu0 0.0
        %1076 = vmatmul.mubr.f32.gmra.mxu0 %v943
        %v1077 = vpop.f32.mrf.mxu0
        %v1078 = vadd.f32 0.0, %v1077
        %v1079 = vpop.f32.mrf.mxu0
        %1080 = vmatprep.mubr.f32.mxu0 0.0
        %1081 = vmatmul.mubr.f32.gmra.mxu0 %v944
        %v1082 = vpop.f32.mrf.mxu0
        %v1083 = vadd.f32 0.0, %v1082
        %v1084 = vpop.f32.mrf.mxu0
        %1085 = vmatprep.mubr.f32.mxu0 0.0
        %1086 = vmatmul.mubr.f32.gmra.mxu0 %v945
        %v1087 = vpop.f32.mrf.mxu0
        %v1088 = vadd.f32 0.0, %v1087
        %v1089 = vpop.f32.mrf.mxu0
        %1090 = vmatprep.mubr.f32.mxu0 0.0
        %1091 = vmatmul.mubr.f32.gmra.mxu0 %v946
        %v1092 = vpop.f32.mrf.mxu0
        %v1093 = vadd.f32 0.0, %v1092
        %v1094 = vpop.f32.mrf.mxu0
        %1095 = vmatprep.mubr.f32.mxu0 0.0
        %1096 = vmatmul.mubr.f32.gmra.mxu0 %v947
        %v1097 = vpop.f32.mrf.mxu0
        %v1098 = vadd.f32 0.0, %v1097
        %v1099 = vpop.f32.mrf.mxu0
        %1100 = vmatprep.mubr.f32.mxu0 0.0
        %1101 = vmatmul.mubr.f32.gmra.mxu0 %v948
        %v1102 = vpop.f32.mrf.mxu0
        %v1103 = vadd.f32 0.0, %v1102
        %v1104 = vpop.f32.mrf.mxu0
        %1105 = vmatprep.mubr.f32.mxu0 0.0
        %1106 = vmatmul.mubr.f32.gmra.mxu0 %v949
        %v1107 = vpop.f32.mrf.mxu0
        %v1108 = vadd.f32 0.0, %v1107
        %v1109 = vpop.f32.mrf.mxu0
        %1110 = vdwg.mxu0
        %v1111 = vrcp.pop %v1033
        %v1112 = vrcp.pop %v1038
        %v1113 = vrcp.pop %v1043
        %v1114 = vrcp.pop %v1048
        %v1115 = vrcp.pop %v1053
        %v1116 = vrcp.pop %v1058
        %v1117 = vrcp.pop %v1063
        %v1118 = vrcp.pop %v1068
        %v1119 = vrcp.pop %v1073
        %v1120 = vrcp.pop %v1078
        %v1121 = vrcp.pop %v1083
        %v1122 = vrcp.pop %v1088
        %v1123 = vrcp.pop %v1093
        %v1124 = vrcp.pop %v1098
        %v1125 = vrcp.pop %v1103
        %v1126 = vrcp.pop %v1108
        %1128 = vset.pattern.permute.xlu0 127
        %1129 = vperm.xlu0 %1128, %v1111
        %v1130 = vpop.permute.xlu0 %1129
        %1133 = vset.pattern.permute.xlu0 127
        %1134 = vperm.xlu0 %1133, %v1112
        %v1135 = vpop.permute.xlu0 %1134
        %1138 = vset.pattern.permute.xlu0 127
        %1139 = vperm.xlu0 %1138, %v1113
        %v1140 = vpop.permute.xlu0 %1139
        %1143 = vset.pattern.permute.xlu0 127
        %1144 = vperm.xlu0 %1143, %v1114
        %v1145 = vpop.permute.xlu0 %1144
        %1148 = vset.pattern.permute.xlu0 127
        %1149 = vperm.xlu0 %1148, %v1115
        %v1150 = vpop.permute.xlu0 %1149
        %1153 = vset.pattern.permute.xlu0 127
        %1154 = vperm.xlu0 %1153, %v1116
        %v1155 = vpop.permute.xlu0 %1154
        %1158 = vset.pattern.permute.xlu0 127
        %1159 = vperm.xlu0 %1158, %v1117
        %v1160 = vpop.permute.xlu0 %1159
        %1163 = vset.pattern.permute.xlu0 127
        %1164 = vperm.xlu0 %1163, %v1118
        %v1165 = vpop.permute.xlu0 %1164
        %1168 = vset.pattern.permute.xlu0 127
        %1169 = vperm.xlu0 %1168, %v1119
        %v1170 = vpop.permute.xlu0 %1169
        %1173 = vset.pattern.permute.xlu0 127
        %1174 = vperm.xlu0 %1173, %v1120
        %v1175 = vpop.permute.xlu0 %1174
        %1178 = vset.pattern.permute.xlu0 127
        %1179 = vperm.xlu0 %1178, %v1121
        %v1180 = vpop.permute.xlu0 %1179
        %1183 = vset.pattern.permute.xlu0 127
        %1184 = vperm.xlu0 %1183, %v1122
        %v1185 = vpop.permute.xlu0 %1184
        %1188 = vset.pattern.permute.xlu0 127
        %1189 = vperm.xlu0 %1188, %v1123
        %v1190 = vpop.permute.xlu0 %1189
        %1193 = vset.pattern.permute.xlu0 127
        %1194 = vperm.xlu0 %1193, %v1124
        %v1195 = vpop.permute.xlu0 %1194
        %1198 = vset.pattern.permute.xlu0 127
        %1199 = vperm.xlu0 %1198, %v1125
        %v1200 = vpop.permute.xlu0 %1199
        %1203 = vset.pattern.permute.xlu0 127
        %1204 = vperm.xlu0 %1203, %v1126
        %v1205 = vpop.permute.xlu0 %1204
        %v1207 = vmul.f32 %v1033, %v1130
        %v1208 = vmul.f32 %v1038, %v1135
        %v1209 = vmul.f32 %v1043, %v1140
        %v1210 = vmul.f32 %v1048, %v1145
        %v1211 = vmul.f32 %v1053, %v1150
        %v1212 = vmul.f32 %v1058, %v1155
        %v1213 = vmul.f32 %v1063, %v1160
        %v1214 = vmul.f32 %v1068, %v1165
        %v1215 = vmul.f32 %v1073, %v1170
        %v1216 = vmul.f32 %v1078, %v1175
        %v1217 = vmul.f32 %v1083, %v1180
        %v1218 = vmul.f32 %v1088, %v1185
        %v1219 = vmul.f32 %v1093, %v1190
        %v1220 = vmul.f32 %v1098, %v1195
        %v1221 = vmul.f32 %v1103, %v1200
        %v1222 = vmul.f32 %v1108, %v1205
        %vm1223 = vcmp.gt.f32.partialorder %v1207, 0.0
        %vm1224 = vcmp.gt.f32.partialorder %v1208, 0.0
        %vm1225 = vcmp.gt.f32.partialorder %v1209, 0.0
        %vm1226 = vcmp.gt.f32.partialorder %v1210, 0.0
        %vm1227 = vcmp.gt.f32.partialorder %v1211, 0.0
        %vm1228 = vcmp.gt.f32.partialorder %v1212, 0.0
        %vm1229 = vcmp.gt.f32.partialorder %v1213, 0.0
        %vm1230 = vcmp.gt.f32.partialorder %v1214, 0.0
        %vm1231 = vcmp.gt.f32.partialorder %v1215, 0.0
        %vm1232 = vcmp.gt.f32.partialorder %v1216, 0.0
        %vm1233 = vcmp.gt.f32.partialorder %v1217, 0.0
        %vm1234 = vcmp.gt.f32.partialorder %v1218, 0.0
        %vm1235 = vcmp.gt.f32.partialorder %v1219, 0.0
        %vm1236 = vcmp.gt.f32.partialorder %v1220, 0.0
        %vm1237 = vcmp.gt.f32.partialorder %v1221, 0.0
        %vm1238 = vcmp.gt.f32.partialorder %v1222, 0.0
        %v1239 = vmin.f32 %v1207, 0.0
        %v1240 = vmin.f32 %v1208, 0.0
        %v1241 = vmin.f32 %v1209, 0.0
        %v1242 = vmin.f32 %v1210, 0.0
        %v1243 = vmin.f32 %v1211, 0.0
        %v1244 = vmin.f32 %v1212, 0.0
        %v1245 = vmin.f32 %v1213, 0.0
        %v1246 = vmin.f32 %v1214, 0.0
        %v1247 = vmin.f32 %v1215, 0.0
        %v1248 = vmin.f32 %v1216, 0.0
        %v1249 = vmin.f32 %v1217, 0.0
        %v1250 = vmin.f32 %v1218, 0.0
        %v1251 = vmin.f32 %v1219, 0.0
        %v1252 = vmin.f32 %v1220, 0.0
        %v1253 = vmin.f32 %v1221, 0.0
        %v1254 = vmin.f32 %v1222, 0.0
        %v1255 = vmul.f32 %v1239, 1.442695
        %v1256 = vpow.pop %v1255
        %v1257 = vmul.f32 %v1240, 1.442695
        %v1258 = vpow.pop %v1257
        %v1259 = vmul.f32 %v1241, 1.442695
        %v1260 = vpow.pop %v1259
        %v1261 = vmul.f32 %v1242, 1.442695
        %v1262 = vpow.pop %v1261
        %v1263 = vmul.f32 %v1243, 1.442695
        %v1264 = vpow.pop %v1263
        %v1265 = vmul.f32 %v1244, 1.442695
        %v1266 = vpow.pop %v1265
        %v1267 = vmul.f32 %v1245, 1.442695
        %v1268 = vpow.pop %v1267
        %v1269 = vmul.f32 %v1246, 1.442695
        %v1270 = vpow.pop %v1269
        %v1271 = vmul.f32 %v1247, 1.442695
        %v1272 = vpow.pop %v1271
        %v1273 = vmul.f32 %v1248, 1.442695
        %v1274 = vpow.pop %v1273
        %v1275 = vmul.f32 %v1249, 1.442695
        %v1276 = vpow.pop %v1275
        %v1277 = vmul.f32 %v1250, 1.442695
        %v1278 = vpow.pop %v1277
        %v1279 = vmul.f32 %v1251, 1.442695
        %v1280 = vpow.pop %v1279
        %v1281 = vmul.f32 %v1252, 1.442695
        %v1282 = vpow.pop %v1281
        %v1283 = vmul.f32 %v1253, 1.442695
        %v1284 = vpow.pop %v1283
        %v1285 = vmul.f32 %v1254, 1.442695
        %v1286 = vpow.pop %v1285
        %v1287 = vsub.f32 %v1256, 1.0
        %v1288 = vsub.f32 %v1258, 1.0
        %v1289 = vsub.f32 %v1260, 1.0
        %v1290 = vsub.f32 %v1262, 1.0
        %v1291 = vsub.f32 %v1264, 1.0
        %v1292 = vsub.f32 %v1266, 1.0
        %v1293 = vsub.f32 %v1268, 1.0
        %v1294 = vsub.f32 %v1270, 1.0
        %v1295 = vsub.f32 %v1272, 1.0
        %v1296 = vsub.f32 %v1274, 1.0
        %v1297 = vsub.f32 %v1276, 1.0
        %v1298 = vsub.f32 %v1278, 1.0
        %v1299 = vsub.f32 %v1280, 1.0
        %v1300 = vsub.f32 %v1282, 1.0
        %v1301 = vsub.f32 %v1284, 1.0
        %v1302 = vsub.f32 %v1286, 1.0
        %v1303 = vsel %vm1223, %v1207, %v1287
        %v1304 = vsel %vm1224, %v1208, %v1288
        %v1305 = vsel %vm1225, %v1209, %v1289
        %v1306 = vsel %vm1226, %v1210, %v1290
        %v1307 = vsel %vm1227, %v1211, %v1291
        %v1308 = vsel %vm1228, %v1212, %v1292
        %v1309 = vsel %vm1229, %v1213, %v1293
        %v1310 = vsel %vm1230, %v1214, %v1294
        %v1311 = vsel %vm1231, %v1215, %v1295
        %v1312 = vsel %vm1232, %v1216, %v1296
        %v1313 = vsel %vm1233, %v1217, %v1297
        %v1314 = vsel %vm1234, %v1218, %v1298
        %v1315 = vsel %vm1235, %v1219, %v1299
        %v1316 = vsel %vm1236, %v1220, %v1300
        %v1317 = vsel %vm1237, %v1221, %v1301
        %v1318 = vsel %vm1238, %v1222, %v1302
        %s1319 = scalar_lea.vmem [#allocation5], 128
        %v1320 = vld [vmem:[%s1319] sm:$0xff]
        %v1321 = vld [vmem:[%s1319 + $0x8] sm:$0xff]
        %v1322 = vld [vmem:[%s1319 + $0x10] sm:$0xff]
        %v1323 = vld [vmem:[%s1319 + $0x18] sm:$0xff]
        %v1324 = vld [vmem:[%s1319 + $0x20] sm:$0xff]
        %v1325 = vld [vmem:[%s1319 + $0x28] sm:$0xff]
        %v1326 = vld [vmem:[%s1319 + $0x30] sm:$0xff]
        %v1327 = vld [vmem:[%s1319 + $0x38] sm:$0xff]
        %v1328 = vld [vmem:[%s1319 + $0x40] sm:$0xff]
        %v1329 = vld [vmem:[%s1319 + $0x48] sm:$0xff]
        %v1330 = vld [vmem:[%s1319 + $0x50] sm:$0xff]
        %v1331 = vld [vmem:[%s1319 + $0x58] sm:$0xff]
        %v1332 = vld [vmem:[%s1319 + $0x60] sm:$0xff]
        %v1333 = vld [vmem:[%s1319 + $0x68] sm:$0xff]
        %v1334 = vld [vmem:[%s1319 + $0x70] sm:$0xff]
        %v1335 = vld [vmem:[%s1319 + $0x78] sm:$0xff]
        %s1336 = scalar_lea.vmem %s3, 128
        %v1337 = vld [vmem:[%s1336] sm:$0xff]
        %v1338 = vld [vmem:[%s1336 + $0x8] sm:$0xff]
        %v1339 = vld [vmem:[%s1336 + $0x10] sm:$0xff]
        %v1340 = vld [vmem:[%s1336 + $0x18] sm:$0xff]
        %v1341 = vld [vmem:[%s1336 + $0x20] sm:$0xff]
        %v1342 = vld [vmem:[%s1336 + $0x28] sm:$0xff]
        %v1343 = vld [vmem:[%s1336 + $0x30] sm:$0xff]
        %v1344 = vld [vmem:[%s1336 + $0x38] sm:$0xff]
        %v1345 = vld [vmem:[%s1336 + $0x40] sm:$0xff]
        %v1346 = vld [vmem:[%s1336 + $0x48] sm:$0xff]
        %v1347 = vld [vmem:[%s1336 + $0x50] sm:$0xff]
        %v1348 = vld [vmem:[%s1336 + $0x58] sm:$0xff]
        %v1349 = vld [vmem:[%s1336 + $0x60] sm:$0xff]
        %v1350 = vld [vmem:[%s1336 + $0x68] sm:$0xff]
        %v1351 = vld [vmem:[%s1336 + $0x70] sm:$0xff]
        %v1352 = vld [vmem:[%s1336 + $0x78] sm:$0xff]
        %s1353 = scalar_lea.vmem %s4, 1
        %v1354 = vld [vmem:[%s1353] sm:$0x1]
        %1355 = vmatprep.subr.mxu0 0.0
        %1356 = vmatpush1.msra.mxu0 %v1335
        %1357 = vmatprep.subr.mxu0 0.0
        %1358 = vmatpush1.msra.mxu0 %v1334
        %1359 = vmatprep.subr.mxu0 0.0
        %1360 = vmatpush1.msra.mxu0 %v1333
        %1361 = vmatprep.subr.mxu0 0.0
        %1362 = vmatpush1.msra.mxu0 %v1332
        %1363 = vmatprep.subr.mxu0 0.0
        %1364 = vmatpush1.msra.mxu0 %v1331
        %1365 = vmatprep.subr.mxu0 0.0
        %1366 = vmatpush1.msra.mxu0 %v1330
        %1367 = vmatprep.subr.mxu0 0.0
        %1368 = vmatpush1.msra.mxu0 %v1329
        %1369 = vmatprep.subr.mxu0 0.0
        %1370 = vmatpush1.msra.mxu0 %v1328
        %1371 = vmatprep.subr.mxu0 0.0
        %1372 = vmatpush1.msra.mxu0 %v1327
        %1373 = vmatprep.subr.mxu0 0.0
        %1374 = vmatpush1.msra.mxu0 %v1326
        %1375 = vmatprep.subr.mxu0 0.0
        %1376 = vmatpush1.msra.mxu0 %v1325
        %1377 = vmatprep.subr.mxu0 0.0
        %1378 = vmatpush1.msra.mxu0 %v1324
        %1379 = vmatprep.subr.mxu0 0.0
        %1380 = vmatpush1.msra.mxu0 %v1323
        %1381 = vmatprep.subr.mxu0 0.0
        %1382 = vmatpush1.msra.mxu0 %v1322
        %1383 = vmatprep.subr.mxu0 0.0
        %1384 = vmatpush1.msra.mxu0 %v1321
        %1385 = vmatprep.subr.mxu0 0.0
        %1386 = vmatpush1.msra.mxu0 %v1320
        %1387 = vmatprep.subr.mxu0 0.0
        %1388 = vmatpush2.msra.mxu0 0.0
        %1389 = vmatprep.subr.mxu0 0.0
        %1390 = vmatpush2.msra.mxu0 0.0
        %1391 = vmatprep.subr.mxu0 0.0
        %1392 = vmatpush2.msra.mxu0 0.0
        %1393 = vmatprep.subr.mxu0 0.0
        %1394 = vmatpush2.msra.mxu0 0.0
        %1395 = vmatprep.subr.mxu0 0.0
        %1396 = vmatpush2.msra.mxu0 0.0
        %1397 = vmatprep.subr.mxu0 0.0
        %1398 = vmatpush2.msra.mxu0 0.0
        %1399 = vmatprep.subr.mxu0 0.0
        %1400 = vmatpush2.msra.mxu0 0.0
        %1401 = vmatprep.subr.mxu0 0.0
        %1402 = vmatpush2.msra.mxu0 0.0
        %1403 = vmatprep.subr.mxu0 0.0
        %1404 = vmatpush2.msra.mxu0 0.0
        %1405 = vmatprep.subr.mxu0 0.0
        %1406 = vmatpush2.msra.mxu0 0.0
        %1407 = vmatprep.subr.mxu0 0.0
        %1408 = vmatpush2.msra.mxu0 0.0
        %1409 = vmatprep.subr.mxu0 0.0
        %1410 = vmatpush2.msra.mxu0 0.0
        %1411 = vmatprep.subr.mxu0 0.0
        %1412 = vmatpush2.msra.mxu0 0.0
        %1413 = vmatprep.subr.mxu0 0.0
        %1414 = vmatpush2.msra.mxu0 0.0
        %1415 = vmatprep.subr.mxu0 0.0
        %1416 = vmatpush2.msra.mxu0 0.0
        %1417 = vmatprep.subr.mxu0 0.0
        %1418 = vmatpush2.msra.mxu0 0.0
        %1419 = vmatprep.mubr.f32.mxu0 0.0
        %1420 = vmatmul.mubr.f32.gmra.mxu0 %v1303
        %v1421 = vpop.f32.mrf.mxu0
        %v1422 = vadd.f32 0.0, %v1421
        %v1423 = vpop.f32.mrf.mxu0
        %1424 = vmatprep.mubr.f32.mxu0 0.0
        %1425 = vmatmul.mubr.f32.gmra.mxu0 %v1304
        %v1426 = vpop.f32.mrf.mxu0
        %v1427 = vadd.f32 0.0, %v1426
        %v1428 = vpop.f32.mrf.mxu0
        %1429 = vmatprep.mubr.f32.mxu0 0.0
        %1430 = vmatmul.mubr.f32.gmra.mxu0 %v1305
        %v1431 = vpop.f32.mrf.mxu0
        %v1432 = vadd.f32 0.0, %v1431
        %v1433 = vpop.f32.mrf.mxu0
        %1434 = vmatprep.mubr.f32.mxu0 0.0
        %1435 = vmatmul.mubr.f32.gmra.mxu0 %v1306
        %v1436 = vpop.f32.mrf.mxu0
        %v1437 = vadd.f32 0.0, %v1436
        %v1438 = vpop.f32.mrf.mxu0
        %1439 = vmatprep.mubr.f32.mxu0 0.0
        %1440 = vmatmul.mubr.f32.gmra.mxu0 %v1307
        %v1441 = vpop.f32.mrf.mxu0
        %v1442 = vadd.f32 0.0, %v1441
        %v1443 = vpop.f32.mrf.mxu0
        %1444 = vmatprep.mubr.f32.mxu0 0.0
        %1445 = vmatmul.mubr.f32.gmra.mxu0 %v1308
        %v1446 = vpop.f32.mrf.mxu0
        %v1447 = vadd.f32 0.0, %v1446
        %v1448 = vpop.f32.mrf.mxu0
        %1449 = vmatprep.mubr.f32.mxu0 0.0
        %1450 = vmatmul.mubr.f32.gmra.mxu0 %v1309
        %v1451 = vpop.f32.mrf.mxu0
        %v1452 = vadd.f32 0.0, %v1451
        %v1453 = vpop.f32.mrf.mxu0
        %1454 = vmatprep.mubr.f32.mxu0 0.0
        %1455 = vmatmul.mubr.f32.gmra.mxu0 %v1310
        %v1456 = vpop.f32.mrf.mxu0
        %v1457 = vadd.f32 0.0, %v1456
        %v1458 = vpop.f32.mrf.mxu0
        %1459 = vmatprep.mubr.f32.mxu0 0.0
        %1460 = vmatmul.mubr.f32.gmra.mxu0 %v1311
        %v1461 = vpop.f32.mrf.mxu0
        %v1462 = vadd.f32 0.0, %v1461
        %v1463 = vpop.f32.mrf.mxu0
        %1464 = vmatprep.mubr.f32.mxu0 0.0
        %1465 = vmatmul.mubr.f32.gmra.mxu0 %v1312
        %v1466 = vpop.f32.mrf.mxu0
        %v1467 = vadd.f32 0.0, %v1466
        %v1468 = vpop.f32.mrf.mxu0
        %1469 = vmatprep.mubr.f32.mxu0 0.0
        %1470 = vmatmul.mubr.f32.gmra.mxu0 %v1313
        %v1471 = vpop.f32.mrf.mxu0
        %v1472 = vadd.f32 0.0, %v1471
        %v1473 = vpop.f32.mrf.mxu0
        %1474 = vmatprep.mubr.f32.mxu0 0.0
        %1475 = vmatmul.mubr.f32.gmra.mxu0 %v1314
        %v1476 = vpop.f32.mrf.mxu0
        %v1477 = vadd.f32 0.0, %v1476
        %v1478 = vpop.f32.mrf.mxu0
        %1479 = vmatprep.mubr.f32.mxu0 0.0
        %1480 = vmatmul.mubr.f32.gmra.mxu0 %v1315
        %v1481 = vpop.f32.mrf.mxu0
        %v1482 = vadd.f32 0.0, %v1481
        %v1483 = vpop.f32.mrf.mxu0
        %1484 = vmatprep.mubr.f32.mxu0 0.0
        %1485 = vmatmul.mubr.f32.gmra.mxu0 %v1316
        %v1486 = vpop.f32.mrf.mxu0
        %v1487 = vadd.f32 0.0, %v1486
        %v1488 = vpop.f32.mrf.mxu0
        %1489 = vmatprep.mubr.f32.mxu0 0.0
        %1490 = vmatmul.mubr.f32.gmra.mxu0 %v1317
        %v1491 = vpop.f32.mrf.mxu0
        %v1492 = vadd.f32 0.0, %v1491
        %v1493 = vpop.f32.mrf.mxu0
        %1494 = vmatprep.mubr.f32.mxu0 0.0
        %1495 = vmatmul.mubr.f32.gmra.mxu0 %v1318
        %v1496 = vpop.f32.mrf.mxu0
        %v1497 = vadd.f32 0.0, %v1496
        %v1498 = vpop.f32.mrf.mxu0
        %1499 = vdwg.mxu0
        %1500 = vmatprep.subr.mxu0 0.0
        %1501 = vmatpush1.msra.mxu0 %v1352
        %1502 = vmatprep.subr.mxu0 0.0
        %1503 = vmatpush1.msra.mxu0 %v1351
        %1504 = vmatprep.subr.mxu0 0.0
        %1505 = vmatpush1.msra.mxu0 %v1350
        %1506 = vmatprep.subr.mxu0 0.0
        %1507 = vmatpush1.msra.mxu0 %v1349
        %1508 = vmatprep.subr.mxu0 0.0
        %1509 = vmatpush1.msra.mxu0 %v1348
        %1510 = vmatprep.subr.mxu0 0.0
        %1511 = vmatpush1.msra.mxu0 %v1347
        %1512 = vmatprep.subr.mxu0 0.0
        %1513 = vmatpush1.msra.mxu0 %v1346
        %1514 = vmatprep.subr.mxu0 0.0
        %1515 = vmatpush1.msra.mxu0 %v1345
        %1516 = vmatprep.subr.mxu0 0.0
        %1517 = vmatpush1.msra.mxu0 %v1344
        %1518 = vmatprep.subr.mxu0 0.0
        %1519 = vmatpush1.msra.mxu0 %v1343
        %1520 = vmatprep.subr.mxu0 0.0
        %1521 = vmatpush1.msra.mxu0 %v1342
        %1522 = vmatprep.subr.mxu0 0.0
        %1523 = vmatpush1.msra.mxu0 %v1341
        %1524 = vmatprep.subr.mxu0 0.0
        %1525 = vmatpush1.msra.mxu0 %v1340
        %1526 = vmatprep.subr.mxu0 0.0
        %1527 = vmatpush1.msra.mxu0 %v1339
        %1528 = vmatprep.subr.mxu0 0.0
        %1529 = vmatpush1.msra.mxu0 %v1338
        %1530 = vmatprep.subr.mxu0 0.0
        %1531 = vmatpush1.msra.mxu0 %v1337
        %1532 = vmatprep.subr.mxu0 0.0
        %1533 = vmatpush2.msra.mxu0 0.0
        %1534 = vmatprep.subr.mxu0 0.0
        %1535 = vmatpush2.msra.mxu0 0.0
        %1536 = vmatprep.subr.mxu0 0.0
        %1537 = vmatpush2.msra.mxu0 0.0
        %1538 = vmatprep.subr.mxu0 0.0
        %1539 = vmatpush2.msra.mxu0 0.0
        %1540 = vmatprep.subr.mxu0 0.0
        %1541 = vmatpush2.msra.mxu0 0.0
        %1542 = vmatprep.subr.mxu0 0.0
        %1543 = vmatpush2.msra.mxu0 0.0
        %1544 = vmatprep.subr.mxu0 0.0
        %1545 = vmatpush2.msra.mxu0 0.0
        %1546 = vmatprep.subr.mxu0 0.0
        %1547 = vmatpush2.msra.mxu0 0.0
        %1548 = vmatprep.subr.mxu0 0.0
        %1549 = vmatpush2.msra.mxu0 0.0
        %1550 = vmatprep.subr.mxu0 0.0
        %1551 = vmatpush2.msra.mxu0 0.0
        %1552 = vmatprep.subr.mxu0 0.0
        %1553 = vmatpush2.msra.mxu0 0.0
        %1554 = vmatprep.subr.mxu0 0.0
        %1555 = vmatpush2.msra.mxu0 0.0
        %1556 = vmatprep.subr.mxu0 0.0
        %1557 = vmatpush2.msra.mxu0 0.0
        %1558 = vmatprep.subr.mxu0 0.0
        %1559 = vmatpush2.msra.mxu0 0.0
        %1560 = vmatprep.subr.mxu0 0.0
        %1561 = vmatpush2.msra.mxu0 0.0
        %1562 = vmatprep.subr.mxu0 0.0
        %1563 = vmatpush2.msra.mxu0 0.0
        %1564 = vmatprep.mubr.f32.mxu0 0.0
        %1565 = vmatmul.mubr.f32.gmra.mxu0 %v1303
        %v1566 = vpop.f32.mrf.mxu0
        %v1567 = vadd.f32 0.0, %v1566
        %v1568 = vpop.f32.mrf.mxu0
        %1569 = vmatprep.mubr.f32.mxu0 0.0
        %1570 = vmatmul.mubr.f32.gmra.mxu0 %v1304
        %v1571 = vpop.f32.mrf.mxu0
        %v1572 = vadd.f32 0.0, %v1571
        %v1573 = vpop.f32.mrf.mxu0
        %1574 = vmatprep.mubr.f32.mxu0 0.0
        %1575 = vmatmul.mubr.f32.gmra.mxu0 %v1305
        %v1576 = vpop.f32.mrf.mxu0
        %v1577 = vadd.f32 0.0, %v1576
        %v1578 = vpop.f32.mrf.mxu0
        %1579 = vmatprep.mubr.f32.mxu0 0.0
        %1580 = vmatmul.mubr.f32.gmra.mxu0 %v1306
        %v1581 = vpop.f32.mrf.mxu0
        %v1582 = vadd.f32 0.0, %v1581
        %v1583 = vpop.f32.mrf.mxu0
        %1584 = vmatprep.mubr.f32.mxu0 0.0
        %1585 = vmatmul.mubr.f32.gmra.mxu0 %v1307
        %v1586 = vpop.f32.mrf.mxu0
        %v1587 = vadd.f32 0.0, %v1586
        %v1588 = vpop.f32.mrf.mxu0
        %1589 = vmatprep.mubr.f32.mxu0 0.0
        %1590 = vmatmul.mubr.f32.gmra.mxu0 %v1308
        %v1591 = vpop.f32.mrf.mxu0
        %v1592 = vadd.f32 0.0, %v1591
        %v1593 = vpop.f32.mrf.mxu0
        %1594 = vmatprep.mubr.f32.mxu0 0.0
        %1595 = vmatmul.mubr.f32.gmra.mxu0 %v1309
        %v1596 = vpop.f32.mrf.mxu0
        %v1597 = vadd.f32 0.0, %v1596
        %v1598 = vpop.f32.mrf.mxu0
        %1599 = vmatprep.mubr.f32.mxu0 0.0
        %1600 = vmatmul.mubr.f32.gmra.mxu0 %v1310
        %v1601 = vpop.f32.mrf.mxu0
        %v1602 = vadd.f32 0.0, %v1601
        %v1603 = vpop.f32.mrf.mxu0
        %1604 = vmatprep.mubr.f32.mxu0 0.0
        %1605 = vmatmul.mubr.f32.gmra.mxu0 %v1311
        %v1606 = vpop.f32.mrf.mxu0
        %v1607 = vadd.f32 0.0, %v1606
        %v1608 = vpop.f32.mrf.mxu0
        %1609 = vmatprep.mubr.f32.mxu0 0.0
        %1610 = vmatmul.mubr.f32.gmra.mxu0 %v1312
        %v1611 = vpop.f32.mrf.mxu0
        %v1612 = vadd.f32 0.0, %v1611
        %v1613 = vpop.f32.mrf.mxu0
        %1614 = vmatprep.mubr.f32.mxu0 0.0
        %1615 = vmatmul.mubr.f32.gmra.mxu0 %v1313
        %v1616 = vpop.f32.mrf.mxu0
        %v1617 = vadd.f32 0.0, %v1616
        %v1618 = vpop.f32.mrf.mxu0
        %1619 = vmatprep.mubr.f32.mxu0 0.0
        %1620 = vmatmul.mubr.f32.gmra.mxu0 %v1314
        %v1621 = vpop.f32.mrf.mxu0
        %v1622 = vadd.f32 0.0, %v1621
        %v1623 = vpop.f32.mrf.mxu0
        %1624 = vmatprep.mubr.f32.mxu0 0.0
        %1625 = vmatmul.mubr.f32.gmra.mxu0 %v1315
        %v1626 = vpop.f32.mrf.mxu0
        %v1627 = vadd.f32 0.0, %v1626
        %v1628 = vpop.f32.mrf.mxu0
        %1629 = vmatprep.mubr.f32.mxu0 0.0
        %1630 = vmatmul.mubr.f32.gmra.mxu0 %v1316
        %v1631 = vpop.f32.mrf.mxu0
        %v1632 = vadd.f32 0.0, %v1631
        %v1633 = vpop.f32.mrf.mxu0
        %1634 = vmatprep.mubr.f32.mxu0 0.0
        %1635 = vmatmul.mubr.f32.gmra.mxu0 %v1317
        %v1636 = vpop.f32.mrf.mxu0
        %v1637 = vadd.f32 0.0, %v1636
        %v1638 = vpop.f32.mrf.mxu0
        %1639 = vmatprep.mubr.f32.mxu0 0.0
        %1640 = vmatmul.mubr.f32.gmra.mxu0 %v1318
        %v1641 = vpop.f32.mrf.mxu0
        %v1642 = vadd.f32 0.0, %v1641
        %v1643 = vpop.f32.mrf.mxu0
        %1644 = vdwg.mxu0
        %1645 = vmatprep.subr.mxu0 0.0
        %1646 = vmatpush1.xpose.msra.mxu0 %v1318
        %1647 = vmatprep.subr.mxu0 0.0
        %1648 = vmatpush1.xpose.msra.mxu0 %v1317
        %1649 = vmatprep.subr.mxu0 0.0
        %1650 = vmatpush1.xpose.msra.mxu0 %v1316
        %1651 = vmatprep.subr.mxu0 0.0
        %1652 = vmatpush1.xpose.msra.mxu0 %v1315
        %1653 = vmatprep.subr.mxu0 0.0
        %1654 = vmatpush1.xpose.msra.mxu0 %v1314
        %1655 = vmatprep.subr.mxu0 0.0
        %1656 = vmatpush1.xpose.msra.mxu0 %v1313
        %1657 = vmatprep.subr.mxu0 0.0
        %1658 = vmatpush1.xpose.msra.mxu0 %v1312
        %1659 = vmatprep.subr.mxu0 0.0
        %1660 = vmatpush1.xpose.msra.mxu0 %v1311
        %1661 = vmatprep.subr.mxu0 0.0
        %1662 = vmatpush1.xpose.msra.mxu0 %v1310
        %1663 = vmatprep.subr.mxu0 0.0
        %1664 = vmatpush1.xpose.msra.mxu0 %v1309
        %1665 = vmatprep.subr.mxu0 0.0
        %1666 = vmatpush1.xpose.msra.mxu0 %v1308
        %1667 = vmatprep.subr.mxu0 0.0
        %1668 = vmatpush1.xpose.msra.mxu0 %v1307
        %1669 = vmatprep.subr.mxu0 0.0
        %1670 = vmatpush1.xpose.msra.mxu0 %v1306
        %1671 = vmatprep.subr.mxu0 0.0
        %1672 = vmatpush1.xpose.msra.mxu0 %v1305
        %1673 = vmatprep.subr.mxu0 0.0
        %1674 = vmatpush1.xpose.msra.mxu0 %v1304
        %1675 = vmatprep.subr.mxu0 0.0
        %1676 = vmatpush1.xpose.msra.mxu0 %v1303
        %1677 = vmatprep.subr.mxu0 0.0
        %1678 = vmatpush2.xpose.msra.mxu0 0.0
        %1679 = vmatprep.subr.mxu0 0.0
        %1680 = vmatpush2.xpose.msra.mxu0 0.0
        %1681 = vmatprep.subr.mxu0 0.0
        %1682 = vmatpush2.xpose.msra.mxu0 0.0
        %1683 = vmatprep.subr.mxu0 0.0
        %1684 = vmatpush2.xpose.msra.mxu0 0.0
        %1685 = vmatprep.subr.mxu0 0.0
        %1686 = vmatpush2.xpose.msra.mxu0 0.0
        %1687 = vmatprep.subr.mxu0 0.0
        %1688 = vmatpush2.xpose.msra.mxu0 0.0
        %1689 = vmatprep.subr.mxu0 0.0
        %1690 = vmatpush2.xpose.msra.mxu0 0.0
        %1691 = vmatprep.subr.mxu0 0.0
        %1692 = vmatpush2.xpose.msra.mxu0 0.0
        %1693 = vmatprep.subr.mxu0 0.0
        %1694 = vmatpush2.xpose.msra.mxu0 0.0
        %1695 = vmatprep.subr.mxu0 0.0
        %1696 = vmatpush2.xpose.msra.mxu0 0.0
        %1697 = vmatprep.subr.mxu0 0.0
        %1698 = vmatpush2.xpose.msra.mxu0 0.0
        %1699 = vmatprep.subr.mxu0 0.0
        %1700 = vmatpush2.xpose.msra.mxu0 0.0
        %1701 = vmatprep.subr.mxu0 0.0
        %1702 = vmatpush2.xpose.msra.mxu0 0.0
        %1703 = vmatprep.subr.mxu0 0.0
        %1704 = vmatpush2.xpose.msra.mxu0 0.0
        %1705 = vmatprep.subr.mxu0 0.0
        %1706 = vmatpush2.xpose.msra.mxu0 0.0
        %1707 = vmatprep.subr.mxu0 0.0
        %1708 = vmatpush2.xpose.msra.mxu0 0.0
        %1709 = vmatprep.mubr.f32.mxu0 0.0
        %1710 = vmatmul.mubr.f32.gmra.mxu0 %v1354
        %v1711 = vpop.f32.mrf.mxu0
        %v1712 = vadd.f32 0.0, %v1711
        %v1713 = vpop.f32.mrf.mxu0
        %1714 = vdwg.mxu0
        %1716 = vset.pattern.permute.xlu0 0
        %1717 = vperm.xlu0 %1716, %v1567
        %v1718 = vpop.permute.xlu0 %1717
        %1721 = vset.pattern.permute.xlu0 0
        %1722 = vperm.xlu0 %1721, %v1572
        %v1723 = vpop.permute.xlu0 %1722
        %1726 = vset.pattern.permute.xlu0 0
        %1727 = vperm.xlu0 %1726, %v1577
        %v1728 = vpop.permute.xlu0 %1727
        %1731 = vset.pattern.permute.xlu0 0
        %1732 = vperm.xlu0 %1731, %v1582
        %v1733 = vpop.permute.xlu0 %1732
        %1736 = vset.pattern.permute.xlu0 0
        %1737 = vperm.xlu0 %1736, %v1587
        %v1738 = vpop.permute.xlu0 %1737
        %1741 = vset.pattern.permute.xlu0 0
        %1742 = vperm.xlu0 %1741, %v1592
        %v1743 = vpop.permute.xlu0 %1742
        %1746 = vset.pattern.permute.xlu0 0
        %1747 = vperm.xlu0 %1746, %v1597
        %v1748 = vpop.permute.xlu0 %1747
        %1751 = vset.pattern.permute.xlu0 0
        %1752 = vperm.xlu0 %1751, %v1602
        %v1753 = vpop.permute.xlu0 %1752
        %1756 = vset.pattern.permute.xlu0 0
        %1757 = vperm.xlu0 %1756, %v1607
        %v1758 = vpop.permute.xlu0 %1757
        %1761 = vset.pattern.permute.xlu0 0
        %1762 = vperm.xlu0 %1761, %v1612
        %v1763 = vpop.permute.xlu0 %1762
        %1766 = vset.pattern.permute.xlu0 0
        %1767 = vperm.xlu0 %1766, %v1617
        %v1768 = vpop.permute.xlu0 %1767
        %1771 = vset.pattern.permute.xlu0 0
        %1772 = vperm.xlu0 %1771, %v1622
        %v1773 = vpop.permute.xlu0 %1772
        %1776 = vset.pattern.permute.xlu0 0
        %1777 = vperm.xlu0 %1776, %v1627
        %v1778 = vpop.permute.xlu0 %1777
        %1781 = vset.pattern.permute.xlu0 0
        %1782 = vperm.xlu0 %1781, %v1632
        %v1783 = vpop.permute.xlu0 %1782
        %1786 = vset.pattern.permute.xlu0 0
        %1787 = vperm.xlu0 %1786, %v1637
        %v1788 = vpop.permute.xlu0 %1787
        %1791 = vset.pattern.permute.xlu0 0
        %1792 = vperm.xlu0 %1791, %v1642
        %v1793 = vpop.permute.xlu0 %1792
        %v1795 = vlaneseq
        %v1796 = vshrl.u32 %v1795, 7
        %v1797 = vsub.s32 0, %v1796
        %v1798 = vrot.slane %v1712, %v1797
        %v1799 = vadd.f32 %v1718, %v1798
        %v1800 = vadd.f32 %v1723, %v1798
        %v1801 = vadd.f32 %v1728, %v1798
        %v1802 = vadd.f32 %v1733, %v1798
        %v1803 = vadd.f32 %v1738, %v1798
        %v1804 = vadd.f32 %v1743, %v1798
        %v1805 = vadd.f32 %v1748, %v1798
        %v1806 = vadd.f32 %v1753, %v1798
        %v1807 = vadd.f32 %v1758, %v1798
        %v1808 = vadd.f32 %v1763, %v1798
        %v1809 = vadd.f32 %v1768, %v1798
        %v1810 = vadd.f32 %v1773, %v1798
        %v1811 = vadd.f32 %v1778, %v1798
        %v1812 = vadd.f32 %v1783, %v1798
        %v1813 = vadd.f32 %v1788, %v1798
        %v1814 = vadd.f32 %v1793, %v1798
        %vm1815 = vcmp.gt.f32.partialorder %v1799, 0.0
        %vm1816 = vcmp.gt.f32.partialorder %v1800, 0.0
        %vm1817 = vcmp.gt.f32.partialorder %v1801, 0.0
        %vm1818 = vcmp.gt.f32.partialorder %v1802, 0.0
        %vm1819 = vcmp.gt.f32.partialorder %v1803, 0.0
        %vm1820 = vcmp.gt.f32.partialorder %v1804, 0.0
        %vm1821 = vcmp.gt.f32.partialorder %v1805, 0.0
        %vm1822 = vcmp.gt.f32.partialorder %v1806, 0.0
        %vm1823 = vcmp.gt.f32.partialorder %v1807, 0.0
        %vm1824 = vcmp.gt.f32.partialorder %v1808, 0.0
        %vm1825 = vcmp.gt.f32.partialorder %v1809, 0.0
        %vm1826 = vcmp.gt.f32.partialorder %v1810, 0.0
        %vm1827 = vcmp.gt.f32.partialorder %v1811, 0.0
        %vm1828 = vcmp.gt.f32.partialorder %v1812, 0.0
        %vm1829 = vcmp.gt.f32.partialorder %v1813, 0.0
        %vm1830 = vcmp.gt.f32.partialorder %v1814, 0.0
        %v1831 = vmul.f32 %v1799, 0.2
        %v1832 = vmul.f32 %v1800, 0.2
        %v1833 = vmul.f32 %v1801, 0.2
        %v1834 = vmul.f32 %v1802, 0.2
        %v1835 = vmul.f32 %v1803, 0.2
        %v1836 = vmul.f32 %v1804, 0.2
        %v1837 = vmul.f32 %v1805, 0.2
        %v1838 = vmul.f32 %v1806, 0.2
        %v1839 = vmul.f32 %v1807, 0.2
        %v1840 = vmul.f32 %v1808, 0.2
        %v1841 = vmul.f32 %v1809, 0.2
        %v1842 = vmul.f32 %v1810, 0.2
        %v1843 = vmul.f32 %v1811, 0.2
        %v1844 = vmul.f32 %v1812, 0.2
        %v1845 = vmul.f32 %v1813, 0.2
        %v1846 = vmul.f32 %v1814, 0.2
        %v1847 = vsel %vm1815, %v1799, %v1831
        %v1848 = vsel %vm1816, %v1800, %v1832
        %v1849 = vsel %vm1817, %v1801, %v1833
        %v1850 = vsel %vm1818, %v1802, %v1834
        %v1851 = vsel %vm1819, %v1803, %v1835
        %v1852 = vsel %vm1820, %v1804, %v1836
        %v1853 = vsel %vm1821, %v1805, %v1837
        %v1854 = vsel %vm1822, %v1806, %v1838
        %v1855 = vsel %vm1823, %v1807, %v1839
        %v1856 = vsel %vm1824, %v1808, %v1840
        %v1857 = vsel %vm1825, %v1809, %v1841
        %v1858 = vsel %vm1826, %v1810, %v1842
        %v1859 = vsel %vm1827, %v1811, %v1843
        %v1860 = vsel %vm1828, %v1812, %v1844
        %v1861 = vsel %vm1829, %v1813, %v1845
        %v1862 = vsel %vm1830, %v1814, %v1846
        %v1863 = vsub.f32 0.0, %v1847
        %v1864 = vsub.f32 0.0, %v1848
        %v1865 = vsub.f32 0.0, %v1849
        %v1866 = vsub.f32 0.0, %v1850
        %v1867 = vsub.f32 0.0, %v1851
        %v1868 = vsub.f32 0.0, %v1852
        %v1869 = vsub.f32 0.0, %v1853
        %v1870 = vsub.f32 0.0, %v1854
        %v1871 = vsub.f32 0.0, %v1855
        %v1872 = vsub.f32 0.0, %v1856
        %v1873 = vsub.f32 0.0, %v1857
        %v1874 = vsub.f32 0.0, %v1858
        %v1875 = vsub.f32 0.0, %v1859
        %v1876 = vsub.f32 0.0, %v1860
        %v1877 = vsub.f32 0.0, %v1861
        %v1878 = vsub.f32 0.0, %v1862
        %v1879 = vmul.f32 %v1863, 1.442695
        %v1880 = vpow.pop %v1879
        %v1881 = vmul.f32 %v1864, 1.442695
        %v1882 = vpow.pop %v1881
        %v1883 = vmul.f32 %v1865, 1.442695
        %v1884 = vpow.pop %v1883
        %v1885 = vmul.f32 %v1866, 1.442695
        %v1886 = vpow.pop %v1885
        %v1887 = vmul.f32 %v1867, 1.442695
        %v1888 = vpow.pop %v1887
        %v1889 = vmul.f32 %v1868, 1.442695
        %v1890 = vpow.pop %v1889
        %v1891 = vmul.f32 %v1869, 1.442695
        %v1892 = vpow.pop %v1891
        %v1893 = vmul.f32 %v1870, 1.442695
        %v1894 = vpow.pop %v1893
        %v1895 = vmul.f32 %v1871, 1.442695
        %v1896 = vpow.pop %v1895
        %v1897 = vmul.f32 %v1872, 1.442695
        %v1898 = vpow.pop %v1897
        %v1899 = vmul.f32 %v1873, 1.442695
        %v1900 = vpow.pop %v1899
        %v1901 = vmul.f32 %v1874, 1.442695
        %v1902 = vpow.pop %v1901
        %v1903 = vmul.f32 %v1875, 1.442695
        %v1904 = vpow.pop %v1903
        %v1905 = vmul.f32 %v1876, 1.442695
        %v1906 = vpow.pop %v1905
        %v1907 = vmul.f32 %v1877, 1.442695
        %v1908 = vpow.pop %v1907
        %v1909 = vmul.f32 %v1878, 1.442695
        %v1910 = vpow.pop %v1909
        %v1911 = vsel %vm326, %v1880, 0.0
        %v1912 = vsel %vm327, %v1882, 0.0
        %v1913 = vsel %vm328, %v1884, 0.0
        %v1914 = vsel %vm329, %v1886, 0.0
        %v1915 = vsel %vm330, %v1888, 0.0
        %v1916 = vsel %vm331, %v1890, 0.0
        %v1917 = vsel %vm332, %v1892, 0.0
        %v1918 = vsel %vm333, %v1894, 0.0
        %v1919 = vsel %vm334, %v1896, 0.0
        %v1920 = vsel %vm335, %v1898, 0.0
        %v1921 = vsel %vm336, %v1900, 0.0
        %v1922 = vsel %vm337, %v1902, 0.0
        %v1923 = vsel %vm338, %v1904, 0.0
        %v1924 = vsel %vm339, %v1906, 0.0
        %v1925 = vsel %vm340, %v1908, 0.0
        %v1926 = vsel %vm341, %v1910, 0.0
        %v1927 = vsel %vm344, 1.0, %v1422
        %v1928 = vsel %vm344, 1.0, %v1427
        %v1929 = vsel %vm344, 1.0, %v1432
        %v1930 = vsel %vm344, 1.0, %v1437
        %v1931 = vsel %vm344, 1.0, %v1442
        %v1932 = vsel %vm344, 1.0, %v1447
        %v1933 = vsel %vm344, 1.0, %v1452
        %v1934 = vsel %vm344, 1.0, %v1457
        %v1935 = vsel %vm344, 1.0, %v1462
        %v1936 = vsel %vm344, 1.0, %v1467
        %v1937 = vsel %vm344, 1.0, %v1472
        %v1938 = vsel %vm344, 1.0, %v1477
        %v1939 = vsel %vm344, 1.0, %v1482
        %v1940 = vsel %vm344, 1.0, %v1487
        %v1941 = vsel %vm344, 1.0, %v1492
        %v1942 = vsel %vm344, 1.0, %v1497
        %1943 = vmatprep.subr.mxu0 0.0
        %1944 = vmatpush1.msra.mxu0 %v1942
        %1945 = vmatprep.subr.mxu0 0.0
        %1946 = vmatpush1.msra.mxu0 %v1941
        %1947 = vmatprep.subr.mxu0 0.0
        %1948 = vmatpush1.msra.mxu0 %v1940
        %1949 = vmatprep.subr.mxu0 0.0
        %1950 = vmatpush1.msra.mxu0 %v1939
        %1951 = vmatprep.subr.mxu0 0.0
        %1952 = vmatpush1.msra.mxu0 %v1938
        %1953 = vmatprep.subr.mxu0 0.0
        %1954 = vmatpush1.msra.mxu0 %v1937
        %1955 = vmatprep.subr.mxu0 0.0
        %1956 = vmatpush1.msra.mxu0 %v1936
        %1957 = vmatprep.subr.mxu0 0.0
        %1958 = vmatpush1.msra.mxu0 %v1935
        %1959 = vmatprep.subr.mxu0 0.0
        %1960 = vmatpush1.msra.mxu0 %v1934
        %1961 = vmatprep.subr.mxu0 0.0
        %1962 = vmatpush1.msra.mxu0 %v1933
        %1963 = vmatprep.subr.mxu0 0.0
        %1964 = vmatpush1.msra.mxu0 %v1932
        %1965 = vmatprep.subr.mxu0 0.0
        %1966 = vmatpush1.msra.mxu0 %v1931
        %1967 = vmatprep.subr.mxu0 0.0
        %1968 = vmatpush1.msra.mxu0 %v1930
        %1969 = vmatprep.subr.mxu0 0.0
        %1970 = vmatpush1.msra.mxu0 %v1929
        %1971 = vmatprep.subr.mxu0 0.0
        %1972 = vmatpush1.msra.mxu0 %v1928
        %1973 = vmatprep.subr.mxu0 0.0
        %1974 = vmatpush1.msra.mxu0 %v1927
        %1975 = vmatprep.subr.mxu0 0.0
        %1976 = vmatpush2.msra.mxu0 0.0
        %1977 = vmatprep.subr.mxu0 0.0
        %1978 = vmatpush2.msra.mxu0 0.0
        %1979 = vmatprep.subr.mxu0 0.0
        %1980 = vmatpush2.msra.mxu0 0.0
        %1981 = vmatprep.subr.mxu0 0.0
        %1982 = vmatpush2.msra.mxu0 0.0
        %1983 = vmatprep.subr.mxu0 0.0
        %1984 = vmatpush2.msra.mxu0 0.0
        %1985 = vmatprep.subr.mxu0 0.0
        %1986 = vmatpush2.msra.mxu0 0.0
        %1987 = vmatprep.subr.mxu0 0.0
        %1988 = vmatpush2.msra.mxu0 0.0
        %1989 = vmatprep.subr.mxu0 0.0
        %1990 = vmatpush2.msra.mxu0 0.0
        %1991 = vmatprep.subr.mxu0 0.0
        %1992 = vmatpush2.msra.mxu0 0.0
        %1993 = vmatprep.subr.mxu0 0.0
        %1994 = vmatpush2.msra.mxu0 0.0
        %1995 = vmatprep.subr.mxu0 0.0
        %1996 = vmatpush2.msra.mxu0 0.0
        %1997 = vmatprep.subr.mxu0 0.0
        %1998 = vmatpush2.msra.mxu0 0.0
        %1999 = vmatprep.subr.mxu0 0.0
        %2000 = vmatpush2.msra.mxu0 0.0
        %2001 = vmatprep.subr.mxu0 0.0
        %2002 = vmatpush2.msra.mxu0 0.0
        %2003 = vmatprep.subr.mxu0 0.0
        %2004 = vmatpush2.msra.mxu0 0.0
        %2005 = vmatprep.subr.mxu0 0.0
        %2006 = vmatpush2.msra.mxu0 0.0
        %2007 = vmatprep.mubr.f32.mxu0 0.0
        %2008 = vmatmul.mubr.f32.gmra.mxu0 %v1911
        %v2009 = vpop.f32.mrf.mxu0
        %v2010 = vadd.f32 0.0, %v2009
        %v2011 = vpop.f32.mrf.mxu0
        %2012 = vmatprep.mubr.f32.mxu0 0.0
        %2013 = vmatmul.mubr.f32.gmra.mxu0 %v1912
        %v2014 = vpop.f32.mrf.mxu0
        %v2015 = vadd.f32 0.0, %v2014
        %v2016 = vpop.f32.mrf.mxu0
        %2017 = vmatprep.mubr.f32.mxu0 0.0
        %2018 = vmatmul.mubr.f32.gmra.mxu0 %v1913
        %v2019 = vpop.f32.mrf.mxu0
        %v2020 = vadd.f32 0.0, %v2019
        %v2021 = vpop.f32.mrf.mxu0
        %2022 = vmatprep.mubr.f32.mxu0 0.0
        %2023 = vmatmul.mubr.f32.gmra.mxu0 %v1914
        %v2024 = vpop.f32.mrf.mxu0
        %v2025 = vadd.f32 0.0, %v2024
        %v2026 = vpop.f32.mrf.mxu0
        %2027 = vmatprep.mubr.f32.mxu0 0.0
        %2028 = vmatmul.mubr.f32.gmra.mxu0 %v1915
        %v2029 = vpop.f32.mrf.mxu0
        %v2030 = vadd.f32 0.0, %v2029
        %v2031 = vpop.f32.mrf.mxu0
        %2032 = vmatprep.mubr.f32.mxu0 0.0
        %2033 = vmatmul.mubr.f32.gmra.mxu0 %v1916
        %v2034 = vpop.f32.mrf.mxu0
        %v2035 = vadd.f32 0.0, %v2034
        %v2036 = vpop.f32.mrf.mxu0
        %2037 = vmatprep.mubr.f32.mxu0 0.0
        %2038 = vmatmul.mubr.f32.gmra.mxu0 %v1917
        %v2039 = vpop.f32.mrf.mxu0
        %v2040 = vadd.f32 0.0, %v2039
        %v2041 = vpop.f32.mrf.mxu0
        %2042 = vmatprep.mubr.f32.mxu0 0.0
        %2043 = vmatmul.mubr.f32.gmra.mxu0 %v1918
        %v2044 = vpop.f32.mrf.mxu0
        %v2045 = vadd.f32 0.0, %v2044
        %v2046 = vpop.f32.mrf.mxu0
        %2047 = vmatprep.mubr.f32.mxu0 0.0
        %2048 = vmatmul.mubr.f32.gmra.mxu0 %v1919
        %v2049 = vpop.f32.mrf.mxu0
        %v2050 = vadd.f32 0.0, %v2049
        %v2051 = vpop.f32.mrf.mxu0
        %2052 = vmatprep.mubr.f32.mxu0 0.0
        %2053 = vmatmul.mubr.f32.gmra.mxu0 %v1920
        %v2054 = vpop.f32.mrf.mxu0
        %v2055 = vadd.f32 0.0, %v2054
        %v2056 = vpop.f32.mrf.mxu0
        %2057 = vmatprep.mubr.f32.mxu0 0.0
        %2058 = vmatmul.mubr.f32.gmra.mxu0 %v1921
        %v2059 = vpop.f32.mrf.mxu0
        %v2060 = vadd.f32 0.0, %v2059
        %v2061 = vpop.f32.mrf.mxu0
        %2062 = vmatprep.mubr.f32.mxu0 0.0
        %2063 = vmatmul.mubr.f32.gmra.mxu0 %v1922
        %v2064 = vpop.f32.mrf.mxu0
        %v2065 = vadd.f32 0.0, %v2064
        %v2066 = vpop.f32.mrf.mxu0
        %2067 = vmatprep.mubr.f32.mxu0 0.0
        %2068 = vmatmul.mubr.f32.gmra.mxu0 %v1923
        %v2069 = vpop.f32.mrf.mxu0
        %v2070 = vadd.f32 0.0, %v2069
        %v2071 = vpop.f32.mrf.mxu0
        %2072 = vmatprep.mubr.f32.mxu0 0.0
        %2073 = vmatmul.mubr.f32.gmra.mxu0 %v1924
        %v2074 = vpop.f32.mrf.mxu0
        %v2075 = vadd.f32 0.0, %v2074
        %v2076 = vpop.f32.mrf.mxu0
        %2077 = vmatprep.mubr.f32.mxu0 0.0
        %2078 = vmatmul.mubr.f32.gmra.mxu0 %v1925
        %v2079 = vpop.f32.mrf.mxu0
        %v2080 = vadd.f32 0.0, %v2079
        %v2081 = vpop.f32.mrf.mxu0
        %2082 = vmatprep.mubr.f32.mxu0 0.0
        %2083 = vmatmul.mubr.f32.gmra.mxu0 %v1926
        %v2084 = vpop.f32.mrf.mxu0
        %v2085 = vadd.f32 0.0, %v2084
        %v2086 = vpop.f32.mrf.mxu0
        %2087 = vdwg.mxu0
        %v2088 = vrcp.pop %v2010
        %v2089 = vrcp.pop %v2015
        %v2090 = vrcp.pop %v2020
        %v2091 = vrcp.pop %v2025
        %v2092 = vrcp.pop %v2030
        %v2093 = vrcp.pop %v2035
        %v2094 = vrcp.pop %v2040
        %v2095 = vrcp.pop %v2045
        %v2096 = vrcp.pop %v2050
        %v2097 = vrcp.pop %v2055
        %v2098 = vrcp.pop %v2060
        %v2099 = vrcp.pop %v2065
        %v2100 = vrcp.pop %v2070
        %v2101 = vrcp.pop %v2075
        %v2102 = vrcp.pop %v2080
        %v2103 = vrcp.pop %v2085
        %2105 = vset.pattern.permute.xlu0 127
        %2106 = vperm.xlu0 %2105, %v2088
        %v2107 = vpop.permute.xlu0 %2106
        %2110 = vset.pattern.permute.xlu0 127
        %2111 = vperm.xlu0 %2110, %v2089
        %v2112 = vpop.permute.xlu0 %2111
        %2115 = vset.pattern.permute.xlu0 127
        %2116 = vperm.xlu0 %2115, %v2090
        %v2117 = vpop.permute.xlu0 %2116
        %2120 = vset.pattern.permute.xlu0 127
        %2121 = vperm.xlu0 %2120, %v2091
        %v2122 = vpop.permute.xlu0 %2121
        %2125 = vset.pattern.permute.xlu0 127
        %2126 = vperm.xlu0 %2125, %v2092
        %v2127 = vpop.permute.xlu0 %2126
        %2130 = vset.pattern.permute.xlu0 127
        %2131 = vperm.xlu0 %2130, %v2093
        %v2132 = vpop.permute.xlu0 %2131
        %2135 = vset.pattern.permute.xlu0 127
        %2136 = vperm.xlu0 %2135, %v2094
        %v2137 = vpop.permute.xlu0 %2136
        %2140 = vset.pattern.permute.xlu0 127
        %2141 = vperm.xlu0 %2140, %v2095
        %v2142 = vpop.permute.xlu0 %2141
        %2145 = vset.pattern.permute.xlu0 127
        %2146 = vperm.xlu0 %2145, %v2096
        %v2147 = vpop.permute.xlu0 %2146
        %2150 = vset.pattern.permute.xlu0 127
        %2151 = vperm.xlu0 %2150, %v2097
        %v2152 = vpop.permute.xlu0 %2151
        %2155 = vset.pattern.permute.xlu0 127
        %2156 = vperm.xlu0 %2155, %v2098
        %v2157 = vpop.permute.xlu0 %2156
        %2160 = vset.pattern.permute.xlu0 127
        %2161 = vperm.xlu0 %2160, %v2099
        %v2162 = vpop.permute.xlu0 %2161
        %2165 = vset.pattern.permute.xlu0 127
        %2166 = vperm.xlu0 %2165, %v2100
        %v2167 = vpop.permute.xlu0 %2166
        %2170 = vset.pattern.permute.xlu0 127
        %2171 = vperm.xlu0 %2170, %v2101
        %v2172 = vpop.permute.xlu0 %2171
        %2175 = vset.pattern.permute.xlu0 127
        %2176 = vperm.xlu0 %2175, %v2102
        %v2177 = vpop.permute.xlu0 %2176
        %2180 = vset.pattern.permute.xlu0 127
        %2181 = vperm.xlu0 %2180, %v2103
        %v2182 = vpop.permute.xlu0 %2181
        %v2184 = vmul.f32 %v2010, %v2107
        %v2185 = vmul.f32 %v2015, %v2112
        %v2186 = vmul.f32 %v2020, %v2117
        %v2187 = vmul.f32 %v2025, %v2122
        %v2188 = vmul.f32 %v2030, %v2127
        %v2189 = vmul.f32 %v2035, %v2132
        %v2190 = vmul.f32 %v2040, %v2137
        %v2191 = vmul.f32 %v2045, %v2142
        %v2192 = vmul.f32 %v2050, %v2147
        %v2193 = vmul.f32 %v2055, %v2152
        %v2194 = vmul.f32 %v2060, %v2157
        %v2195 = vmul.f32 %v2065, %v2162
        %v2196 = vmul.f32 %v2070, %v2167
        %v2197 = vmul.f32 %v2075, %v2172
        %v2198 = vmul.f32 %v2080, %v2177
        %v2199 = vmul.f32 %v2085, %v2182
        %vm2200 = vcmp.gt.f32.partialorder %v2184, 0.0
        %vm2201 = vcmp.gt.f32.partialorder %v2185, 0.0
        %vm2202 = vcmp.gt.f32.partialorder %v2186, 0.0
        %vm2203 = vcmp.gt.f32.partialorder %v2187, 0.0
        %vm2204 = vcmp.gt.f32.partialorder %v2188, 0.0
        %vm2205 = vcmp.gt.f32.partialorder %v2189, 0.0
        %vm2206 = vcmp.gt.f32.partialorder %v2190, 0.0
        %vm2207 = vcmp.gt.f32.partialorder %v2191, 0.0
        %vm2208 = vcmp.gt.f32.partialorder %v2192, 0.0
        %vm2209 = vcmp.gt.f32.partialorder %v2193, 0.0
        %vm2210 = vcmp.gt.f32.partialorder %v2194, 0.0
        %vm2211 = vcmp.gt.f32.partialorder %v2195, 0.0
        %vm2212 = vcmp.gt.f32.partialorder %v2196, 0.0
        %vm2213 = vcmp.gt.f32.partialorder %v2197, 0.0
        %vm2214 = vcmp.gt.f32.partialorder %v2198, 0.0
        %vm2215 = vcmp.gt.f32.partialorder %v2199, 0.0
        %v2216 = vmin.f32 %v2184, 0.0
        %v2217 = vmin.f32 %v2185, 0.0
        %v2218 = vmin.f32 %v2186, 0.0
        %v2219 = vmin.f32 %v2187, 0.0
        %v2220 = vmin.f32 %v2188, 0.0
        %v2221 = vmin.f32 %v2189, 0.0
        %v2222 = vmin.f32 %v2190, 0.0
        %v2223 = vmin.f32 %v2191, 0.0
        %v2224 = vmin.f32 %v2192, 0.0
        %v2225 = vmin.f32 %v2193, 0.0
        %v2226 = vmin.f32 %v2194, 0.0
        %v2227 = vmin.f32 %v2195, 0.0
        %v2228 = vmin.f32 %v2196, 0.0
        %v2229 = vmin.f32 %v2197, 0.0
        %v2230 = vmin.f32 %v2198, 0.0
        %v2231 = vmin.f32 %v2199, 0.0
        %v2232 = vmul.f32 %v2216, 1.442695
        %v2233 = vpow.pop %v2232
        %v2234 = vmul.f32 %v2217, 1.442695
        %v2235 = vpow.pop %v2234
        %v2236 = vmul.f32 %v2218, 1.442695
        %v2237 = vpow.pop %v2236
        %v2238 = vmul.f32 %v2219, 1.442695
        %v2239 = vpow.pop %v2238
        %v2240 = vmul.f32 %v2220, 1.442695
        %v2241 = vpow.pop %v2240
        %v2242 = vmul.f32 %v2221, 1.442695
        %v2243 = vpow.pop %v2242
        %v2244 = vmul.f32 %v2222, 1.442695
        %v2245 = vpow.pop %v2244
        %v2246 = vmul.f32 %v2223, 1.442695
        %v2247 = vpow.pop %v2246
        %v2248 = vmul.f32 %v2224, 1.442695
        %v2249 = vpow.pop %v2248
        %v2250 = vmul.f32 %v2225, 1.442695
        %v2251 = vpow.pop %v2250
        %v2252 = vmul.f32 %v2226, 1.442695
        %v2253 = vpow.pop %v2252
        %v2254 = vmul.f32 %v2227, 1.442695
        %v2255 = vpow.pop %v2254
        %v2256 = vmul.f32 %v2228, 1.442695
        %v2257 = vpow.pop %v2256
        %v2258 = vmul.f32 %v2229, 1.442695
        %v2259 = vpow.pop %v2258
        %v2260 = vmul.f32 %v2230, 1.442695
        %v2261 = vpow.pop %v2260
        %v2262 = vmul.f32 %v2231, 1.442695
        %v2263 = vpow.pop %v2262
        %v2264 = vsub.f32 %v2233, 1.0
        %v2265 = vsub.f32 %v2235, 1.0
        %v2266 = vsub.f32 %v2237, 1.0
        %v2267 = vsub.f32 %v2239, 1.0
        %v2268 = vsub.f32 %v2241, 1.0
        %v2269 = vsub.f32 %v2243, 1.0
        %v2270 = vsub.f32 %v2245, 1.0
        %v2271 = vsub.f32 %v2247, 1.0
        %v2272 = vsub.f32 %v2249, 1.0
        %v2273 = vsub.f32 %v2251, 1.0
        %v2274 = vsub.f32 %v2253, 1.0
        %v2275 = vsub.f32 %v2255, 1.0
        %v2276 = vsub.f32 %v2257, 1.0
        %v2277 = vsub.f32 %v2259, 1.0
        %v2278 = vsub.f32 %v2261, 1.0
        %v2279 = vsub.f32 %v2263, 1.0
        %v2280 = vsel %vm2200, %v2184, %v2264
        %v2281 = vsel %vm2201, %v2185, %v2265
        %v2282 = vsel %vm2202, %v2186, %v2266
        %v2283 = vsel %vm2203, %v2187, %v2267
        %v2284 = vsel %vm2204, %v2188, %v2268
        %v2285 = vsel %vm2205, %v2189, %v2269
        %v2286 = vsel %vm2206, %v2190, %v2270
        %v2287 = vsel %vm2207, %v2191, %v2271
        %v2288 = vsel %vm2208, %v2192, %v2272
        %v2289 = vsel %vm2209, %v2193, %v2273
        %v2290 = vsel %vm2210, %v2194, %v2274
        %v2291 = vsel %vm2211, %v2195, %v2275
        %v2292 = vsel %vm2212, %v2196, %v2276
        %v2293 = vsel %vm2213, %v2197, %v2277
        %v2294 = vsel %vm2214, %v2198, %v2278
        %v2295 = vsel %vm2215, %v2199, %v2279
        %2296 = vst [vmem:[%s272] sm:$0xff] %v2280
        %2297 = vst [vmem:[%s272 + $0x8] sm:$0xff] %v2281
        %2298 = vst [vmem:[%s272 + $0x10] sm:$0xff] %v2282
        %2299 = vst [vmem:[%s272 + $0x18] sm:$0xff] %v2283
        %2300 = vst [vmem:[%s272 + $0x20] sm:$0xff] %v2284
        %2301 = vst [vmem:[%s272 + $0x28] sm:$0xff] %v2285
        %2302 = vst [vmem:[%s272 + $0x30] sm:$0xff] %v2286
        %2303 = vst [vmem:[%s272 + $0x38] sm:$0xff] %v2287
        %2304 = vst [vmem:[%s272 + $0x40] sm:$0xff] %v2288
        %2305 = vst [vmem:[%s272 + $0x48] sm:$0xff] %v2289
        %2306 = vst [vmem:[%s272 + $0x50] sm:$0xff] %v2290
        %2307 = vst [vmem:[%s272 + $0x58] sm:$0xff] %v2291
        %2308 = vst [vmem:[%s272 + $0x60] sm:$0xff] %v2292
        %2309 = vst [vmem:[%s272 + $0x68] sm:$0xff] %v2293
        %2310 = vst [vmem:[%s272 + $0x70] sm:$0xff] %v2294
        %2311 = vst [vmem:[%s272 + $0x78] sm:$0xff] %v2295
        %s2312 = sand.u32 %s146, 1
        %s2313 = scalar_lea.sflag [#allocation4], %s2312
        %s2314 = sand.u32 %s146, 1
        %s2315 = smul.addr %s2314, 128
        %s2316 = scalar_lea.vmem [#allocation7], %s2315
        // Predicated region
        $region49: #{gat_forward_fused.1} parent=39 // pred_check
          %p2317 = pneg %p156
        $region50: #{gat_forward_fused.1} parent=39 // pred_check_branch
          %2319 = sbr.rel (%p2317) target = $region52
        $region51: #{gat_forward_fused.1} parent=39 // pred_region
          %s2321 = ssub.s32 2048, 2048
          %2322 = vsyncadd %s2313, %s2321
          %s2323 = smul.addr %s23, 16
          %s2324 = smul.addr %s2323, 128
          %s2325 = scalar_lea.hbm %s5, %s2324
          %s2326 = sshll.u32 %s2316, 4
          %s2327 = int_to_ptr.vmem [resolvable:$true] %s2326
          %2332 = dma.vmem_to_hbm [thread:$0]  %s2327, 2048, %s2325, %s2313, 128, 128, 8
        $region52: #{gat_forward_fused.1} parent=39 // pred_fallthru
          _
      $region40: #{gat_forward_fused.1} parent=5 // pred_fallthru
        _
      %p2333 = scmp.le.s32.totalorder 2, %s18
      // Predicated region
      $region53: #{gat_forward_fused.1} parent=5 // pred_check
        %p2334 = pneg %p2333
      $region54: #{gat_forward_fused.1} parent=5 // pred_check_branch
        %2336 = sbr.rel (%p2334) target = $region56
      $region55: #{gat_forward_fused.1} parent=5 // pred_region
        %s2337 = ssub.s32 %s18, 2
        // Predicated region
        $region57: #{gat_forward_fused.1} parent=55 // pred_check
          %p2338 = pneg %p162
        $region58: #{gat_forward_fused.1} parent=55 // pred_check_branch
          %2340 = sbr.rel (%p2338) target = $region60
        $region59: #{gat_forward_fused.1} parent=55 // pred_region
          %s2341 = sand.u32 %s147, 1
          %s2342 = scalar_lea.sflag [#allocation4], %s2341
          %s2343 = sand.u32 %s147, 1
          %s2344 = smul.addr %s2343, 128
          %s2345 = scalar_lea.vmem [#allocation7], %s2344
          %2346 = dma.done %s2342, 2048
        $region60: #{gat_forward_fused.1} parent=55 // pred_fallthru
          _
      $region56: #{gat_forward_fused.1} parent=5 // pred_fallthru
        _
    $region6: #{gat_forward_fused.1} parent=1 // loop_footer
      %s22 = sadd.s32 1, %s18
    $region7: #{gat_forward_fused.1} parent=1 // loop_footer_branch
      %17 = sbr.rel target = $region3
    $region8: #{gat_forward_fused.1} parent=1 // loop_exit
      _
    %2347 = vsyncpa [#allocation3], 1
    %s2348 = scalar_lea.sflag [#allocation3], 1
    %2349 = vsyncpa %s2348, 1
    %2350 = vsyncpa [#allocation6], 1
    %2351 = vsyncpa [#allocation4], 1
    %s2352 = scalar_lea.sflag [#allocation4], 1
    %2353 = vsyncpa %s2352, 1

</llo_original>
